<compile_context>
chip_gen: v6e
topology: v6e:2x2x1
jax: 0.10.0
libtpu: 0.0.40
codegen_flags: <defaults>
</compile_context>

<pallas_src>
import functools
import math

import jax
import jax.numpy as jnp
from jax import lax
from jax.experimental import pallas as pl
from jax.experimental.pallas import tpu as pltpu


# ----------------------------------------------------------------------------
# Kernel: one (batch item, encoder layer) per grid step.
# Grid = (B, n_layers); layer axis is innermost ("arbitrary"); the output block
# for a given batch item stays VMEM-resident across the layer axis and carries
# the running activation.
# ----------------------------------------------------------------------------
def _encoder_layer_kernel(tok_ref, pos_ref, mask_ref,
                          wqkv_ref, bqkv_ref, wo_ref, bo_ref,
                          ln1g_ref, ln1b_ref, w1_ref, b1_ref, w2_ref, b2_ref,
                          ln2g_ref, ln2b_ref,
                          out_ref,
                          qkv_scr, ctx_scr,
                          *, n_heads, head_dim, emb_scale, eps, matmul_dtype):
    S, H = pos_ref.shape
    nh, hd = n_heads, head_dim
    md = matmul_dtype
    layer = pl.program_id(1)

    # ---- embedding combine (only at the first layer of each batch item) ----
    @pl.when(layer == 0)
    def _init():
        out_ref[0] = tok_ref[0] * emb_scale + pos_ref[...]

    x = out_ref[0]                      # (S, H) f32 — activation carried across layers
    mask = mask_ref[0]                  # (1, S); 1.0 keep, 0.0 pad

    def layer_norm(z, g, b):
        mu = jnp.mean(z, axis=-1, keepdims=True)
        var = jnp.mean((z - mu) ** 2, axis=-1, keepdims=True)
        return (z - mu) * lax.rsqrt(var + eps) * g + b

    def mm(a, w):
        # MXU matmul: operands in matmul_dtype (bf16 on hardware builds), f32 accum.
        return jnp.dot(a.astype(md), w.astype(md),
                       preferred_element_type=jnp.float32)

    # ---- multi-head self-attention -----------------------------------------
    # Fused, lane-dense Q/K/V projection: (S, H) @ (H, 3H).
    # 1/sqrt(head_dim) is already folded into the Wq / bq columns host-side.
    qkv_scr[...] = mm(x, wqkv_ref[0]) + bqkv_ref[0]           # (S, 3H) f32

    for h in range(nh):                 # heads are intrinsically per-head matmuls
        qh = qkv_scr[:, h * hd:(h + 1) * hd]                   # (S, hd)
        kh = qkv_scr[:, H + h * hd:H + (h + 1) * hd]           # (S, hd)
        vh = qkv_scr[:, 2 * H + h * hd:2 * H + (h + 1) * hd]   # (S, hd)

        # scores (S, S) = q @ k^T  (NT contraction), masked softmax over keys
        s = lax.dot_general(qh.astype(md), kh.astype(md),
                            (((1,), (1,)), ((), ())),
                            preferred_element_type=jnp.float32)
        s = jnp.where(mask > 0.0, s, -1e10)
        m = jnp.max(s, axis=-1, keepdims=True)
        p = jnp.exp(s - m)
        denom = jnp.sum(p, axis=-1, keepdims=True)
        p = p * pl.reciprocal(denom, approx=True)              # EUP reciprocal

        # context for this head, written into the merged (S, H) scratch
        ctx_scr[:, h * hd:(h + 1) * hd] = mm(p, vh)            # (S, hd) f32

    # Lane-dense output projection: (S, H) @ (H, H)
    attn_out = mm(ctx_scr[...], wo_ref[0]) + bo_ref[0]
    x1 = layer_norm(x + attn_out, ln1g_ref[0], ln1b_ref[0])

    # ---- position-wise feed-forward -----------------------------------------
    h1 = jnp.maximum(mm(x1, w1_ref[0]) + b1_ref[0], 0.0)
    ff = mm(h1, w2_ref[0]) + b2_ref[0]

    out_ref[0] = layer_norm(x1 + ff, ln2g_ref[0], ln2b_ref[0])


def _vmem_limit_bytes(S, H, P, n_heads, weight_bytes):
    """Generation-safe VMEM limit from the actual resident set (not hard-coded)."""
    f32 = 4
    per_layer_w = (H * 3 * H + H * H + 2 * H * P) * weight_bytes \
                  + (9 * H + P) * f32                 # biases + LN params
    resident = (2 * S * H + S) * f32                  # tok + pos + mask blocks
    resident += (S * 3 * H + S * H) * f32             # qkv / ctx scratch
    resident += S * H * f32                           # carried output block
    est = 2 * (per_layer_w + resident)                # double-buffered pipeline
    # floor at the 32 MiB scoped default; cap at 48 MiB so it fits v7x (64 MiB).
    return int(min(48 * 1024 * 1024, max(32 * 1024 * 1024, 2 * est)))


def encoder_pallas(tok_emb, pos_emb, mask3, stacked, *, n_layers, n_heads,
                   hid_dim, eps=1e-5, matmul_dtype=jnp.float32):
    B, S, H = tok_emb.shape
    P = stacked["w1"].shape[-1]
    assert H % n_heads == 0
    hd = H // n_heads
    wbytes = jnp.dtype(matmul_dtype).itemsize

    def wspec(shape):
        nd = len(shape)
        # per-layer weight block streamed along the layer grid axis
        return pl.BlockSpec((1,) + shape, lambda b, l, _nd=nd: (l,) + (0,) * _nd)

    in_specs = [
        pl.BlockSpec((1, S, H), lambda b, l: (b, 0, 0)),   # token embeddings
        pl.BlockSpec((S, H), lambda b, l: (0, 0)),          # positional table slice
        pl.BlockSpec((1, 1, S), lambda b, l: (b, 0, 0)),    # key mask
        wspec((H, 3 * H)),                                   # fused [Wq|Wk|Wv]
        wspec((1, 3 * H)),                                   # fused [bq|bk|bv]
        wspec((H, H)),                                       # Wo
        wspec((1, H)),                                       # bo
        wspec((1, H)), wspec((1, H)),                        # ln1 gamma / beta
        wspec((H, P)), wspec((1, P)),                        # W1, b1
        wspec((P, H)), wspec((1, H)),                        # W2, b2
        wspec((1, H)), wspec((1, H)),                        # ln2 gamma / beta
    ]

    kernel = functools.partial(
        _encoder_layer_kernel, n_heads=n_heads, head_dim=hd,
        emb_scale=float(hid_dim) ** 0.5, eps=float(eps),
        matmul_dtype=matmul_dtype)

    return pl.pallas_call(
        kernel,
        out_shape=jax.ShapeDtypeStruct((B, S, H), jnp.float32),
        grid=(B, n_layers),
        in_specs=in_specs,
        # same output block across the layer axis => stays VMEM-resident and
        # carries the activation between layers.
        out_specs=pl.BlockSpec((1, S, H), lambda b, l: (b, 0, 0)),
        scratch_shapes=[pltpu.VMEM((S, 3 * H), jnp.float32),   # fused QKV slab
                        pltpu.VMEM((S, H), jnp.float32)],      # merged head contexts
        compiler_params=pltpu.CompilerParams(
            dimension_semantics=("parallel", "arbitrary"),
            vmem_limit_bytes=_vmem_limit_bytes(S, H, P, n_heads, wbytes)),
    )(tok_emb, pos_emb, mask3,
      stacked["wqkv"], stacked["bqkv"], stacked["wo"], stacked["bo"],
      stacked["ln1g"], stacked["ln1b"], stacked["w1"], stacked["b1"],
      stacked["w2"], stacked["b2"], stacked["ln2g"], stacked["ln2b"])


# ----------------------------------------------------------------------------
# Parameters (deterministic synthetic init — no checkpoint loading)
# Linear weights stored (in_dim, out_dim)  => y = x @ W + b
# ----------------------------------------------------------------------------
def init_params(key, input_dim, hid_dim, n_layers, n_heads, pf_dim, max_length=100):
    del n_heads
    keys = jax.random.split(key, 2 + n_layers)
    params = {
        "tok_embedding": 0.02 * jax.random.normal(keys[0], (input_dim, hid_dim), jnp.float32),
        "pos_embedding": 0.02 * jax.random.normal(keys[1], (max_length, hid_dim), jnp.float32),
        "layers": [],
    }

    def lin(k, din, dout):
        w = jax.random.normal(k, (din, dout), jnp.float32) / jnp.sqrt(jnp.float32(din))
        b = jnp.zeros((1, dout), jnp.float32)
        return w, b

    for li in range(n_layers):
        lk = jax.random.split(keys[2 + li], 6)
        wq, bq = lin(lk[0], hid_dim, hid_dim)
        wk, bk = lin(lk[1], hid_dim, hid_dim)
        wv, bv = lin(lk[2], hid_dim, hid_dim)
        wo, bo = lin(lk[3], hid_dim, hid_dim)
        w1, b1 = lin(lk[4], hid_dim, pf_dim)
        w2, b2 = lin(lk[5], pf_dim, hid_dim)
        params["layers"].append(dict(
            wq=wq, bq=bq, wk=wk, bk=bk, wv=wv, bv=bv, wo=wo, bo=bo,
            ln1g=jnp.ones((1, hid_dim), jnp.float32),
            ln1b=jnp.zeros((1, hid_dim), jnp.float32),
            w1=w1, b1=b1, w2=w2, b2=b2,
            ln2g=jnp.ones((1, hid_dim), jnp.float32),
            ln2b=jnp.zeros((1, hid_dim), jnp.float32),
        ))
    return params


def stack_layer_params(params, n_heads, matmul_dtype=jnp.float32):
    """Layer-stacked, MXU-friendly packing (plain JAX, done once on the host).

    Wqkv is packed [Wq | Wk | Wv] along the output dim (lane-dense (H, 3H)
    matmul in-kernel); 1/sqrt(head_dim) is folded into the Wq / bq columns.
    Matmul weights are cast to `matmul_dtype` (bf16 for hardware builds);
    biases / LayerNorm params stay f32.
    """
    layers = params["layers"]
    H = layers[0]["wq"].shape[0]
    hd = H // n_heads
    att_scale = 1.0 / math.sqrt(hd)

    wqkv = jnp.stack([jnp.concatenate(
        [lp["wq"] * att_scale, lp["wk"], lp["wv"]], axis=1) for lp in layers])
    bqkv = jnp.stack([jnp.concatenate(
        [lp["bq"] * att_scale, lp["bk"], lp["bv"]], axis=1) for lp in layers])

    def stack(name):
        return jnp.stack([lp[name] for lp in layers])

    return dict(
        wqkv=wqkv.astype(matmul_dtype),
        bqkv=bqkv.astype(jnp.float32),
        wo=stack("wo").astype(matmul_dtype), bo=stack("bo"),
        ln1g=stack("ln1g"), ln1b=stack("ln1b"),
        w1=stack("w1").astype(matmul_dtype), b1=stack("b1"),
        w2=stack("w2").astype(matmul_dtype), b2=stack("b2"),
        ln2g=stack("ln2g"), ln2b=stack("ln2b"))


# ----------------------------------------------------------------------------
# Full Encoder forward (glue around the fused kernel)
# ----------------------------------------------------------------------------
def encoder_forward(src_tokens, src_mask, params, hid_dim, n_heads,
                    matmul_dtype=jnp.float32):
    B, S = src_tokens.shape
    n_layers = len(params["layers"])
    # Embedding gathers are data-dependent row gathers — kept as plain-JAX glue.
    tok = params["tok_embedding"][src_tokens]             # (B, S, H)
    pos = params["pos_embedding"][:S]                     # (S, H); broadcast in-kernel
    mask3 = src_mask.astype(jnp.float32)[:, None, :]      # (B, 1, S)
    stacked = stack_layer_params(params, n_heads, matmul_dtype)
    return encoder_pallas(tok, pos, mask3, stacked,
                          n_layers=n_layers, n_heads=n_heads, hid_dim=hid_dim,
                          matmul_dtype=matmul_dtype)


# ----------------------------------------------------------------------------
# Pure-JAX reference (mirrors PyTorch Encoder, eval mode) for correctness check
# ----------------------------------------------------------------------------
def encoder_reference(src_tokens, src_mask, params, hid_dim, n_heads, eps=1e-5):
    B, S = src_tokens.shape
    H, nh = hid_dim, n_heads
    hd = H // nh

    def layer_norm(z, g, b):
        mu = jnp.mean(z, axis=-1, keepdims=True)
        var = jnp.mean((z - mu) ** 2, axis=-1, keepdims=True)
        return (z - mu) * lax.rsqrt(var + eps) * g + b

    x = params["tok_embedding"][src_tokens] * jnp.sqrt(jnp.float32(H)) \
        + params["pos_embedding"][:S][None]
    mask = src_mask[:, None, None, :]                      # (B,1,1,S)
    for lp in params["layers"]:
        q = x @ lp["wq"] + lp["bq"]
        k = x @ lp["wk"] + lp["bk"]
        v = x @ lp["wv"] + lp["bv"]

        def split(t):
            return t.reshape(B, S, nh, hd).transpose(0, 2, 1, 3)

        qh, kh, vh = split(q), split(k), split(v)
        energy = jnp.einsum("bhqd,bhkd->bhqk", qh, kh) / jnp.sqrt(jnp.float32(hd))
        energy = jnp.where(mask, energy, -1e10)
        attn = jax.nn.softmax(energy, axis=-1)
        ctx = jnp.einsum("bhqk,bhkd->bhqd", attn, vh)
        ctx = ctx.transpose(0, 2, 1, 3).reshape(B, S, H)
        a_out = ctx @ lp["wo"] + lp["bo"]
        x = layer_norm(x + a_out, lp["ln1g"], lp["ln1b"])
        h1 = jax.nn.relu(x @ lp["w1"] + lp["b1"])
        ff = h1 @ lp["w2"] + lp["b2"]
        x = layer_norm(x + ff, lp["ln2g"], lp["ln2b"])
    return x


if __name__ == "__main__":
    B, S = 2, 8
    INPUT_DIM, HID, N_LAYERS, N_HEADS, PF = 50, 32, 2, 4, 64

    key = jax.random.PRNGKey(0)
    pkey, skey = jax.random.split(key)
    params = init_params(pkey, INPUT_DIM, HID, N_LAYERS, N_HEADS, PF)

    src = jax.random.randint(skey, (B, S), 1, INPUT_DIM, dtype=jnp.int32)
    src = src.at[0, 6:].set(0)             # a couple of pad tokens
    src_mask = (src != 0)                  # (B, S), same role as (src != pad_idx)

    ref = encoder_reference(src, src_mask, params, HID, N_HEADS)

    # f32 matmul path: tight check against the reference.
    out = encoder_forward(src, src_mask, params, HID, N_HEADS,
                          matmul_dtype=jnp.float32)
    out = jax.block_until_ready(out)
    assert out.shape == (B, S, HID)
    assert bool(jnp.all(jnp.isfinite(out)))
    err = float(jnp.max(jnp.abs(out - ref)))
    assert err < 5e-2, f"f32 mismatch vs reference: max abs err {err}"

    # bf16 MXU-operand path (deployment setting for v5e/v6e/v7x): looser check.
    out_bf16 = encoder_forward(src, src_mask, params, HID, N_HEADS,
                               matmul_dtype=jnp.bfloat16)
    out_bf16 = jax.block_until_ready(out_bf16)
    assert bool(jnp.all(jnp.isfinite(out_bf16)))
    err_bf16 = float(jnp.max(jnp.abs(out_bf16 - ref)))
    assert err_bf16 < 2e-1, f"bf16 mismatch vs reference: max abs err {err_bf16}"

    print("KERNEL_OK")
</pallas_src>

<mosaic_0001>
module attributes {stable_mosaic.version = 11 : i64} {
  func.func @_encoder_layer_kernel(%arg0: i32, %arg1: i32, %arg2: memref<1x8x32xf32, #tpu.memory_space<vmem>>, %arg3: memref<8x32xf32, #tpu.memory_space<vmem>>, %arg4: memref<1x1x8xf32, #tpu.memory_space<vmem>>, %arg5: memref<1x32x96xf32, #tpu.memory_space<vmem>>, %arg6: memref<1x1x96xf32, #tpu.memory_space<vmem>>, %arg7: memref<1x32x32xf32, #tpu.memory_space<vmem>>, %arg8: memref<1x1x32xf32, #tpu.memory_space<vmem>>, %arg9: memref<1x1x32xf32, #tpu.memory_space<vmem>>, %arg10: memref<1x1x32xf32, #tpu.memory_space<vmem>>, %arg11: memref<1x32x64xf32, #tpu.memory_space<vmem>>, %arg12: memref<1x1x64xf32, #tpu.memory_space<vmem>>, %arg13: memref<1x64x32xf32, #tpu.memory_space<vmem>>, %arg14: memref<1x1x32xf32, #tpu.memory_space<vmem>>, %arg15: memref<1x1x32xf32, #tpu.memory_space<vmem>>, %arg16: memref<1x1x32xf32, #tpu.memory_space<vmem>>, %arg17: memref<1x8x32xf32, #tpu.memory_space<vmem>>, %arg18: memref<8x96xf32, #tpu.memory_space<vmem>>, %arg19: memref<8x32xf32, #tpu.memory_space<vmem>>) attributes {dimension_semantics = [#tpu.dimension_semantics<parallel>, #tpu.dimension_semantics<arbitrary>], iteration_bounds = array<i64: 2, 2>, scalar_prefetch = 0 : i64, scratch_operands = 2 : i64, tpu.core_type = #tpu.core_type<tc>, window_params = [{transform_indices = @transform_0, window_bounds = array<i64: 1, 8, 32>}, {pipeline_mode = #tpu.pipeline_mode<synchronous>, transform_indices = @transform_1, window_bounds = array<i64: 8, 32>}, {transform_indices = @transform_2, window_bounds = array<i64: 1, 1, 8>}, {transform_indices = @transform_3, window_bounds = array<i64: 1, 32, 96>}, {transform_indices = @transform_4, window_bounds = array<i64: 1, 1, 96>}, {transform_indices = @transform_5, window_bounds = array<i64: 1, 32, 32>}, {transform_indices = @transform_6, window_bounds = array<i64: 1, 1, 32>}, {transform_indices = @transform_7, window_bounds = array<i64: 1, 1, 32>}, {transform_indices = @transform_8, window_bounds = array<i64: 1, 1, 32>}, {transform_indices = @transform_9, window_bounds = array<i64: 1, 32, 64>}, {transform_indices = @transform_10, window_bounds = array<i64: 1, 1, 64>}, {transform_indices = @transform_11, window_bounds = array<i64: 1, 64, 32>}, {transform_indices = @transform_12, window_bounds = array<i64: 1, 1, 32>}, {transform_indices = @transform_13, window_bounds = array<i64: 1, 1, 32>}, {transform_indices = @transform_14, window_bounds = array<i64: 1, 1, 32>}, {transform_indices = @transform_15, window_bounds = array<i64: 1, 8, 32>}]} {
    %c0_i32 = arith.constant 0 : i32
    %0 = arith.cmpi eq, %arg1, %c0_i32 : i32
    %1 = arith.extui %0 : i1 to i32
    %c0_i32_0 = arith.constant 0 : i32
    %2 = arith.cmpi ne, %1, %c0_i32_0 : i32
    scf.if %2 {
      %c0_108 = arith.constant 0 : index
      %c0_109 = arith.constant 0 : index
      %c0_110 = arith.constant 0 : index
      %184 = vector.load %arg2[%c0_108, %c0_109, %c0_110] : memref<1x8x32xf32, #tpu.memory_space<vmem>>, vector<1x8x32xf32>
      %185 = vector.shape_cast %184 : vector<1x8x32xf32> to vector<8x32xf32>
      %cst_111 = arith.constant 5.65685415 : f32
      %186 = vector.broadcast %cst_111 : f32 to vector<8x32xf32>
      %187 = arith.mulf %185, %186 : vector<8x32xf32>
      %c0_112 = arith.constant 0 : index
      %c0_113 = arith.constant 0 : index
      %188 = vector.load %arg3[%c0_112, %c0_113] : memref<8x32xf32, #tpu.memory_space<vmem>>, vector<8x32xf32>
      %189 = arith.addf %187, %188 : vector<8x32xf32>
      %c0_114 = arith.constant 0 : index
      %c0_115 = arith.constant 0 : index
      %c0_116 = arith.constant 0 : index
      %190 = vector.load %arg17[%c0_114, %c0_115, %c0_116] : memref<1x8x32xf32, #tpu.memory_space<vmem>>, vector<1x8x32xf32>
      %191 = vector.shape_cast %190 : vector<1x8x32xf32> to vector<8x32xf32>
      %192 = vector.shape_cast %189 : vector<8x32xf32> to vector<1x8x32xf32>
      tpu.vector_store %arg17[%c0_114, %c0_115, %c0_116], %192 {strides = array<i32>} : memref<1x8x32xf32, #tpu.memory_space<vmem>>, vector<1x8x32xf32>,
    } else {
    }
    %c0 = arith.constant 0 : index
    %c0_1 = arith.constant 0 : index
    %c0_2 = arith.constant 0 : index
    %3 = vector.load %arg17[%c0, %c0_1, %c0_2] : memref<1x8x32xf32, #tpu.memory_space<vmem>>, vector<1x8x32xf32>
    %4 = vector.shape_cast %3 : vector<1x8x32xf32> to vector<8x32xf32>
    %c0_3 = arith.constant 0 : index
    %c0_4 = arith.constant 0 : index
    %c0_5 = arith.constant 0 : index
    %5 = vector.load %arg4[%c0_3, %c0_4, %c0_5] : memref<1x1x8xf32, #tpu.memory_space<vmem>>, vector<1x1x8xf32>
    %6 = vector.shape_cast %5 : vector<1x1x8xf32> to vector<1x8xf32>
    %c0_6 = arith.constant 0 : index
    %c0_7 = arith.constant 0 : index
    %c0_8 = arith.constant 0 : index
    %7 = vector.load %arg5[%c0_6, %c0_7, %c0_8] : memref<1x32x96xf32, #tpu.memory_space<vmem>>, vector<1x32x96xf32>
    %8 = vector.shape_cast %7 : vector<1x32x96xf32> to vector<32x96xf32>
    %cst = arith.constant dense<0.000000e+00> : vector<8x96xf32>
    %9 = tpu.matmul %4, %8, %cst {dimension_numbers = #tpu.dot_dimension_numbers<[1], [0], [0], [1], [0, 0, 1, 1], [], []>} : vector<8x32xf32>, vector<32x96xf32>, vector<8x96xf32> -> vector<8x96xf32>
    %c0_9 = arith.constant 0 : index
    %c0_10 = arith.constant 0 : index
    %c0_11 = arith.constant 0 : index
    %10 = vector.load %arg6[%c0_9, %c0_10, %c0_11] : memref<1x1x96xf32, #tpu.memory_space<vmem>>, vector<1x1x96xf32>
    %11 = vector.shape_cast %10 : vector<1x1x96xf32> to vector<1x96xf32>
    %12 = vector.broadcast %11 : vector<1x96xf32> to vector<8x96xf32>
    %13 = arith.addf %9, %12 : vector<8x96xf32>
    %c0_12 = arith.constant 0 : index
    %c0_13 = arith.constant 0 : index
    %14 = vector.load %arg18[%c0_12, %c0_13] : memref<8x96xf32, #tpu.memory_space<vmem>>, vector<8x96xf32>
    tpu.vector_store %arg18[%c0_12, %c0_13], %13 {strides = array<i32>} : memref<8x96xf32, #tpu.memory_space<vmem>>, vector<8x96xf32>,
    %c0_14 = arith.constant 0 : index
    %c0_15 = arith.constant 0 : index
    %15 = vector.load %arg18[%c0_14, %c0_15] : memref<8x96xf32, #tpu.memory_space<vmem>>, vector<8x8xf32>
    %c0_16 = arith.constant 0 : index
    %c32 = arith.constant 32 : index
    %16 = vector.load %arg18[%c0_16, %c32] : memref<8x96xf32, #tpu.memory_space<vmem>>, vector<8x8xf32>
    %c0_17 = arith.constant 0 : index
    %c64 = arith.constant 64 : index
    %17 = vector.load %arg18[%c0_17, %c64] : memref<8x96xf32, #tpu.memory_space<vmem>>, vector<8x8xf32>
    %cst_18 = arith.constant dense<0.000000e+00> : vector<8x8xf32>
    %18 = tpu.matmul %15, %16, %cst_18 {dimension_numbers = #tpu.dot_dimension_numbers<[1], [1], [0], [0], [0, 0, 1, 0], [], []>} : vector<8x8xf32>, vector<8x8xf32>, vector<8x8xf32> -> vector<8x8xf32>
    %cst_19 = arith.constant 0.000000e+00 : f32
    %19 = vector.broadcast %cst_19 : f32 to vector<1x8xf32>
    %20 = arith.cmpf ogt, %6, %19 : vector<1x8xf32>
    %cst_20 = arith.constant -1.000000e+10 : f32
    %21 = vector.shape_cast %20 : vector<1x8xi1> to vector<1x8xi1>
    %22 = vector.broadcast %21 : vector<1x8xi1> to vector<8x8xi1>
    %23 = vector.broadcast %cst_20 : f32 to vector<8x8xf32>
    %24 = arith.select %22, %18, %23 : vector<8x8xi1>, vector<8x8xf32>
    %cst_21 = arith.constant dense<0xFF800000> : vector<8xf32>
    %25 = vector.multi_reduction <maximumf>, %24, %cst_21 [1] : vector<8x8xf32> to vector<8xf32>
    %26 = vector.shape_cast %25 : vector<8xf32> to vector<8x1xf32>
    %27 = vector.broadcast %26 : vector<8x1xf32> to vector<8x8xf32>
    %28 = arith.subf %24, %27 : vector<8x8xf32>
    %29 = math.exp %28 : vector<8x8xf32>
    %cst_22 = arith.constant dense<0.000000e+00> : vector<8xf32>
    %30 = vector.multi_reduction <add>, %29, %cst_22 [1] : vector<8x8xf32> to vector<8xf32>
    %31 = vector.shape_cast %30 : vector<8xf32> to vector<8x1xf32>
    %32 = tpu.reciprocal %31 {approx = true} : vector<8x1xf32> -> vector<8x1xf32>
    %33 = vector.broadcast %32 : vector<8x1xf32> to vector<8x8xf32>
    %34 = arith.mulf %29, %33 : vector<8x8xf32>
    %cst_23 = arith.constant dense<0.000000e+00> : vector<8x8xf32>
    %35 = tpu.matmul %34, %17, %cst_23 {dimension_numbers = #tpu.dot_dimension_numbers<[1], [0], [0], [1], [0, 0, 1, 1], [], []>} : vector<8x8xf32>, vector<8x8xf32>, vector<8x8xf32> -> vector<8x8xf32>
    %c0_24 = arith.constant 0 : index
    %c0_25 = arith.constant 0 : index
    %36 = vector.load %arg19[%c0_24, %c0_25] : memref<8x32xf32, #tpu.memory_space<vmem>>, vector<8x8xf32>
    tpu.vector_store %arg19[%c0_24, %c0_25], %35 {strides = array<i32>} : memref<8x32xf32, #tpu.memory_space<vmem>>, vector<8x8xf32>,
    %c0_26 = arith.constant 0 : index
    %c8 = arith.constant 8 : index
    %37 = vector.load %arg18[%c0_26, %c8] : memref<8x96xf32, #tpu.memory_space<vmem>>, vector<8x8xf32>
    %c0_27 = arith.constant 0 : index
    %c40 = arith.constant 40 : index
    %38 = vector.load %arg18[%c0_27, %c40] : memref<8x96xf32, #tpu.memory_space<vmem>>, vector<8x8xf32>
    %c0_28 = arith.constant 0 : index
    %c72 = arith.constant 72 : index
    %39 = vector.load %arg18[%c0_28, %c72] : memref<8x96xf32, #tpu.memory_space<vmem>>, vector<8x8xf32>
    %cst_29 = arith.constant dense<0.000000e+00> : vector<8x8xf32>
    %40 = tpu.matmul %37, %38, %cst_29 {dimension_numbers = #tpu.dot_dimension_numbers<[1], [1], [0], [0], [0, 0, 1, 0], [], []>} : vector<8x8xf32>, vector<8x8xf32>, vector<8x8xf32> -> vector<8x8xf32>
    %cst_30 = arith.constant 0.000000e+00 : f32
    %41 = vector.broadcast %cst_30 : f32 to vector<1x8xf32>
    %42 = arith.cmpf ogt, %6, %41 : vector<1x8xf32>
    %cst_31 = arith.constant -1.000000e+10 : f32
    %43 = vector.shape_cast %42 : vector<1x8xi1> to vector<1x8xi1>
    %44 = vector.broadcast %43 : vector<1x8xi1> to vector<8x8xi1>
    %45 = vector.broadcast %cst_31 : f32 to vector<8x8xf32>
    %46 = arith.select %44, %40, %45 : vector<8x8xi1>, vector<8x8xf32>
    %cst_32 = arith.constant dense<0xFF800000> : vector<8xf32>
    %47 = vector.multi_reduction <maximumf>, %46, %cst_32 [1] : vector<8x8xf32> to vector<8xf32>
    %48 = vector.shape_cast %47 : vector<8xf32> to vector<8x1xf32>
    %49 = vector.broadcast %48 : vector<8x1xf32> to vector<8x8xf32>
    %50 = arith.subf %46, %49 : vector<8x8xf32>
    %51 = math.exp %50 : vector<8x8xf32>
    %cst_33 = arith.constant dense<0.000000e+00> : vector<8xf32>
    %52 = vector.multi_reduction <add>, %51, %cst_33 [1] : vector<8x8xf32> to vector<8xf32>
    %53 = vector.shape_cast %52 : vector<8xf32> to vector<8x1xf32>
    %54 = tpu.reciprocal %53 {approx = true} : vector<8x1xf32> -> vector<8x1xf32>
    %55 = vector.broadcast %54 : vector<8x1xf32> to vector<8x8xf32>
    %56 = arith.mulf %51, %55 : vector<8x8xf32>
    %cst_34 = arith.constant dense<0.000000e+00> : vector<8x8xf32>
    %57 = tpu.matmul %56, %39, %cst_34 {dimension_numbers = #tpu.dot_dimension_numbers<[1], [0], [0], [1], [0, 0, 1, 1], [], []>} : vector<8x8xf32>, vector<8x8xf32>, vector<8x8xf32> -> vector<8x8xf32>
    %c0_35 = arith.constant 0 : index
    %c8_36 = arith.constant 8 : index
    %58 = vector.load %arg19[%c0_35, %c8_36] : memref<8x32xf32, #tpu.memory_space<vmem>>, vector<8x8xf32>
    tpu.vector_store %arg19[%c0_35, %c8_36], %57 {strides = array<i32>} : memref<8x32xf32, #tpu.memory_space<vmem>>, vector<8x8xf32>,
    %c0_37 = arith.constant 0 : index
    %c16 = arith.constant 16 : index
    %59 = vector.load %arg18[%c0_37, %c16] : memref<8x96xf32, #tpu.memory_space<vmem>>, vector<8x8xf32>
    %c0_38 = arith.constant 0 : index
    %c48 = arith.constant 48 : index
    %60 = vector.load %arg18[%c0_38, %c48] : memref<8x96xf32, #tpu.memory_space<vmem>>, vector<8x8xf32>
    %c0_39 = arith.constant 0 : index
    %c80 = arith.constant 80 : index
    %61 = vector.load %arg18[%c0_39, %c80] : memref<8x96xf32, #tpu.memory_space<vmem>>, vector<8x8xf32>
    %cst_40 = arith.constant dense<0.000000e+00> : vector<8x8xf32>
    %62 = tpu.matmul %59, %60, %cst_40 {dimension_numbers = #tpu.dot_dimension_numbers<[1], [1], [0], [0], [0, 0, 1, 0], [], []>} : vector<8x8xf32>, vector<8x8xf32>, vector<8x8xf32> -> vector<8x8xf32>
    %cst_41 = arith.constant 0.000000e+00 : f32
    %63 = vector.broadcast %cst_41 : f32 to vector<1x8xf32>
    %64 = arith.cmpf ogt, %6, %63 : vector<1x8xf32>
    %cst_42 = arith.constant -1.000000e+10 : f32
    %65 = vector.shape_cast %64 : vector<1x8xi1> to vector<1x8xi1>
    %66 = vector.broadcast %65 : vector<1x8xi1> to vector<8x8xi1>
    %67 = vector.broadcast %cst_42 : f32 to vector<8x8xf32>
    %68 = arith.select %66, %62, %67 : vector<8x8xi1>, vector<8x8xf32>
    %cst_43 = arith.constant dense<0xFF800000> : vector<8xf32>
    %69 = vector.multi_reduction <maximumf>, %68, %cst_43 [1] : vector<8x8xf32> to vector<8xf32>
    %70 = vector.shape_cast %69 : vector<8xf32> to vector<8x1xf32>
    %71 = vector.broadcast %70 : vector<8x1xf32> to vector<8x8xf32>
    %72 = arith.subf %68, %71 : vector<8x8xf32>
    %73 = math.exp %72 : vector<8x8xf32>
    %cst_44 = arith.constant dense<0.000000e+00> : vector<8xf32>
    %74 = vector.multi_reduction <add>, %73, %cst_44 [1] : vector<8x8xf32> to vector<8xf32>
    %75 = vector.shape_cast %74 : vector<8xf32> to vector<8x1xf32>
    %76 = tpu.reciprocal %75 {approx = true} : vector<8x1xf32> -> vector<8x1xf32>
    %77 = vector.broadcast %76 : vector<8x1xf32> to vector<8x8xf32>
    %78 = arith.mulf %73, %77 : vector<8x8xf32>
    %cst_45 = arith.constant dense<0.000000e+00> : vector<8x8xf32>
    %79 = tpu.matmul %78, %61, %cst_45 {dimension_numbers = #tpu.dot_dimension_numbers<[1], [0], [0], [1], [0, 0, 1, 1], [], []>} : vector<8x8xf32>, vector<8x8xf32>, vector<8x8xf32> -> vector<8x8xf32>
    %c0_46 = arith.constant 0 : index
    %c16_47 = arith.constant 16 : index
    %80 = vector.load %arg19[%c0_46, %c16_47] : memref<8x32xf32, #tpu.memory_space<vmem>>, vector<8x8xf32>
    tpu.vector_store %arg19[%c0_46, %c16_47], %79 {strides = array<i32>} : memref<8x32xf32, #tpu.memory_space<vmem>>, vector<8x8xf32>,
    %c0_48 = arith.constant 0 : index
    %c24 = arith.constant 24 : index
    %81 = vector.load %arg18[%c0_48, %c24] : memref<8x96xf32, #tpu.memory_space<vmem>>, vector<8x8xf32>
    %c0_49 = arith.constant 0 : index
    %c56 = arith.constant 56 : index
    %82 = vector.load %arg18[%c0_49, %c56] : memref<8x96xf32, #tpu.memory_space<vmem>>, vector<8x8xf32>
    %c0_50 = arith.constant 0 : index
    %c88 = arith.constant 88 : index
    %83 = vector.load %arg18[%c0_50, %c88] : memref<8x96xf32, #tpu.memory_space<vmem>>, vector<8x8xf32>
    %cst_51 = arith.constant dense<0.000000e+00> : vector<8x8xf32>
    %84 = tpu.matmul %81, %82, %cst_51 {dimension_numbers = #tpu.dot_dimension_numbers<[1], [1], [0], [0], [0, 0, 1, 0], [], []>} : vector<8x8xf32>, vector<8x8xf32>, vector<8x8xf32> -> vector<8x8xf32>
    %cst_52 = arith.constant 0.000000e+00 : f32
    %85 = vector.broadcast %cst_52 : f32 to vector<1x8xf32>
    %86 = arith.cmpf ogt, %6, %85 : vector<1x8xf32>
    %cst_53 = arith.constant -1.000000e+10 : f32
    %87 = vector.shape_cast %86 : vector<1x8xi1> to vector<1x8xi1>
    %88 = vector.broadcast %87 : vector<1x8xi1> to vector<8x8xi1>
    %89 = vector.broadcast %cst_53 : f32 to vector<8x8xf32>
    %90 = arith.select %88, %84, %89 : vector<8x8xi1>, vector<8x8xf32>
    %cst_54 = arith.constant dense<0xFF800000> : vector<8xf32>
    %91 = vector.multi_reduction <maximumf>, %90, %cst_54 [1] : vector<8x8xf32> to vector<8xf32>
    %92 = vector.shape_cast %91 : vector<8xf32> to vector<8x1xf32>
    %93 = vector.broadcast %92 : vector<8x1xf32> to vector<8x8xf32>
    %94 = arith.subf %90, %93 : vector<8x8xf32>
    %95 = math.exp %94 : vector<8x8xf32>
    %cst_55 = arith.constant dense<0.000000e+00> : vector<8xf32>
    %96 = vector.multi_reduction <add>, %95, %cst_55 [1] : vector<8x8xf32> to vector<8xf32>
    %97 = vector.shape_cast %96 : vector<8xf32> to vector<8x1xf32>
    %98 = tpu.reciprocal %97 {approx = true} : vector<8x1xf32> -> vector<8x1xf32>
    %99 = vector.broadcast %98 : vector<8x1xf32> to vector<8x8xf32>
    %100 = arith.mulf %95, %99 : vector<8x8xf32>
    %cst_56 = arith.constant dense<0.000000e+00> : vector<8x8xf32>
    %101 = tpu.matmul %100, %83, %cst_56 {dimension_numbers = #tpu.dot_dimension_numbers<[1], [0], [0], [1], [0, 0, 1, 1], [], []>} : vector<8x8xf32>, vector<8x8xf32>, vector<8x8xf32> -> vector<8x8xf32>
    %c0_57 = arith.constant 0 : index
    %c24_58 = arith.constant 24 : index
    %102 = vector.load %arg19[%c0_57, %c24_58] : memref<8x32xf32, #tpu.memory_space<vmem>>, vector<8x8xf32>
    tpu.vector_store %arg19[%c0_57, %c24_58], %101 {strides = array<i32>} : memref<8x32xf32, #tpu.memory_space<vmem>>, vector<8x8xf32>,
    %c0_59 = arith.constant 0 : index
    %c0_60 = arith.constant 0 : index
    %103 = vector.load %arg19[%c0_59, %c0_60] : memref<8x32xf32, #tpu.memory_space<vmem>>, vector<8x32xf32>
    %c0_61 = arith.constant 0 : index
    %c0_62 = arith.constant 0 : index
    %c0_63 = arith.constant 0 : index
    %104 = vector.load %arg7[%c0_61, %c0_62, %c0_63] : memref<1x32x32xf32, #tpu.memory_space<vmem>>, vector<1x32x32xf32>
    %105 = vector.shape_cast %104 : vector<1x32x32xf32> to vector<32x32xf32>
    %cst_64 = arith.constant dense<0.000000e+00> : vector<8x32xf32>
    %106 = tpu.matmul %103, %105, %cst_64 {dimension_numbers = #tpu.dot_dimension_numbers<[1], [0], [0], [1], [0, 0, 1, 1], [], []>} : vector<8x32xf32>, vector<32x32xf32>, vector<8x32xf32> -> vector<8x32xf32>
    %c0_65 = arith.constant 0 : index
    %c0_66 = arith.constant 0 : index
    %c0_67 = arith.constant 0 : index
    %107 = vector.load %arg8[%c0_65, %c0_66, %c0_67] : memref<1x1x32xf32, #tpu.memory_space<vmem>>, vector<1x1x32xf32>
    %108 = vector.shape_cast %107 : vector<1x1x32xf32> to vector<1x32xf32>
    %109 = vector.broadcast %108 : vector<1x32xf32> to vector<8x32xf32>
    %110 = arith.addf %106, %109 : vector<8x32xf32>
    %111 = arith.addf %4, %110 : vector<8x32xf32>
    %c0_68 = arith.constant 0 : index
    %c0_69 = arith.constant 0 : index
    %c0_70 = arith.constant 0 : index
    %112 = vector.load %arg9[%c0_68, %c0_69, %c0_70] : memref<1x1x32xf32, #tpu.memory_space<vmem>>, vector<1x1x32xf32>
    %113 = vector.shape_cast %112 : vector<1x1x32xf32> to vector<1x32xf32>
    %c0_71 = arith.constant 0 : index
    %c0_72 = arith.constant 0 : index
    %c0_73 = arith.constant 0 : index
    %114 = vector.load %arg10[%c0_71, %c0_72, %c0_73] : memref<1x1x32xf32, #tpu.memory_space<vmem>>, vector<1x1x32xf32>
    %115 = vector.shape_cast %114 : vector<1x1x32xf32> to vector<1x32xf32>
    %cst_74 = arith.constant dense<0.000000e+00> : vector<8xf32>
    %116 = vector.multi_reduction <add>, %111, %cst_74 [1] : vector<8x32xf32> to vector<8xf32>
    %117 = vector.shape_cast %116 : vector<8xf32> to vector<8x1xf32>
    %cst_75 = arith.constant 3.200000e+01 : f32
    %118 = vector.broadcast %cst_75 : f32 to vector<8x1xf32>
    %119 = arith.divf %117, %118 : vector<8x1xf32>
    %120 = vector.broadcast %119 : vector<8x1xf32> to vector<8x32xf32>
    %121 = arith.subf %111, %120 : vector<8x32xf32>
    %122 = arith.mulf %121, %121 : vector<8x32xf32>
    %cst_76 = arith.constant dense<0.000000e+00> : vector<8xf32>
    %123 = vector.multi_reduction <add>, %122, %cst_76 [1] : vector<8x32xf32> to vector<8xf32>
    %124 = vector.shape_cast %123 : vector<8xf32> to vector<8x1xf32>
    %cst_77 = arith.constant 3.200000e+01 : f32
    %125 = vector.broadcast %cst_77 : f32 to vector<8x1xf32>
    %126 = arith.divf %124, %125 : vector<8x1xf32>
    %127 = vector.broadcast %119 : vector<8x1xf32> to vector<8x32xf32>
    %128 = arith.subf %111, %127 : vector<8x32xf32>
    %cst_78 = arith.constant 9.99999974E-6 : f32
    %129 = vector.broadcast %cst_78 : f32 to vector<8x1xf32>
    %130 = arith.addf %126, %129 : vector<8x1xf32>
    %131 = math.rsqrt %130 : vector<8x1xf32>
    %132 = vector.broadcast %131 : vector<8x1xf32> to vector<8x32xf32>
    %133 = arith.mulf %128, %132 : vector<8x32xf32>
    %134 = vector.broadcast %113 : vector<1x32xf32> to vector<8x32xf32>
    %135 = arith.mulf %133, %134 : vector<8x32xf32>
    %136 = vector.broadcast %115 : vector<1x32xf32> to vector<8x32xf32>
    %137 = arith.addf %135, %136 : vector<8x32xf32>
    %c0_79 = arith.constant 0 : index
    %c0_80 = arith.constant 0 : index
    %c0_81 = arith.constant 0 : index
    %138 = vector.load %arg11[%c0_79, %c0_80, %c0_81] : memref<1x32x64xf32, #tpu.memory_space<vmem>>, vector<1x32x64xf32>
    %139 = vector.shape_cast %138 : vector<1x32x64xf32> to vector<32x64xf32>
    %cst_82 = arith.constant dense<0.000000e+00> : vector<8x64xf32>
    %140 = tpu.matmul %137, %139, %cst_82 {dimension_numbers = #tpu.dot_dimension_numbers<[1], [0], [0], [1], [0, 0, 1, 1], [], []>} : vector<8x32xf32>, vector<32x64xf32>, vector<8x64xf32> -> vector<8x64xf32>
    %c0_83 = arith.constant 0 : index
    %c0_84 = arith.constant 0 : index
    %c0_85 = arith.constant 0 : index
    %141 = vector.load %arg12[%c0_83, %c0_84, %c0_85] : memref<1x1x64xf32, #tpu.memory_space<vmem>>, vector<1x1x64xf32>
    %142 = vector.shape_cast %141 : vector<1x1x64xf32> to vector<1x64xf32>
    %143 = vector.broadcast %142 : vector<1x64xf32> to vector<8x64xf32>
    %144 = arith.addf %140, %143 : vector<8x64xf32>
    %cst_86 = arith.constant 0.000000e+00 : f32
    %145 = vector.broadcast %cst_86 : f32 to vector<8x64xf32>
    %146 = arith.maximumf %144, %145 : vector<8x64xf32>
    %c0_87 = arith.constant 0 : index
    %c0_88 = arith.constant 0 : index
    %c0_89 = arith.constant 0 : index
    %147 = vector.load %arg13[%c0_87, %c0_88, %c0_89] : memref<1x64x32xf32, #tpu.memory_space<vmem>>, vector<1x64x32xf32>
    %148 = vector.shape_cast %147 : vector<1x64x32xf32> to vector<64x32xf32>
    %cst_90 = arith.constant dense<0.000000e+00> : vector<8x32xf32>
    %149 = tpu.matmul %146, %148, %cst_90 {dimension_numbers = #tpu.dot_dimension_numbers<[1], [0], [0], [1], [0, 0, 1, 1], [], []>} : vector<8x64xf32>, vector<64x32xf32>, vector<8x32xf32> -> vector<8x32xf32>
    %c0_91 = arith.constant 0 : index
    %c0_92 = arith.constant 0 : index
    %c0_93 = arith.constant 0 : index
    %150 = vector.load %arg14[%c0_91, %c0_92, %c0_93] : memref<1x1x32xf32, #tpu.memory_space<vmem>>, vector<1x1x32xf32>
    %151 = vector.shape_cast %150 : vector<1x1x32xf32> to vector<1x32xf32>
    %152 = vector.broadcast %151 : vector<1x32xf32> to vector<8x32xf32>
    %153 = arith.addf %149, %152 : vector<8x32xf32>
    %154 = arith.addf %137, %153 : vector<8x32xf32>
    %c0_94 = arith.constant 0 : index
    %c0_95 = arith.constant 0 : index
    %c0_96 = arith.constant 0 : index
    %155 = vector.load %arg15[%c0_94, %c0_95, %c0_96] : memref<1x1x32xf32, #tpu.memory_space<vmem>>, vector<1x1x32xf32>
    %156 = vector.shape_cast %155 : vector<1x1x32xf32> to vector<1x32xf32>
    %c0_97 = arith.constant 0 : index
    %c0_98 = arith.constant 0 : index
    %c0_99 = arith.constant 0 : index
    %157 = vector.load %arg16[%c0_97, %c0_98, %c0_99] : memref<1x1x32xf32, #tpu.memory_space<vmem>>, vector<1x1x32xf32>
    %158 = vector.shape_cast %157 : vector<1x1x32xf32> to vector<1x32xf32>
    %cst_100 = arith.constant dense<0.000000e+00> : vector<8xf32>
    %159 = vector.multi_reduction <add>, %154, %cst_100 [1] : vector<8x32xf32> to vector<8xf32>
    %160 = vector.shape_cast %159 : vector<8xf32> to vector<8x1xf32>
    %cst_101 = arith.constant 3.200000e+01 : f32
    %161 = vector.broadcast %cst_101 : f32 to vector<8x1xf32>
    %162 = arith.divf %160, %161 : vector<8x1xf32>
    %163 = vector.broadcast %162 : vector<8x1xf32> to vector<8x32xf32>
    %164 = arith.subf %154, %163 : vector<8x32xf32>
    %165 = arith.mulf %164, %164 : vector<8x32xf32>
    %cst_102 = arith.constant dense<0.000000e+00> : vector<8xf32>
    %166 = vector.multi_reduction <add>, %165, %cst_102 [1] : vector<8x32xf32> to vector<8xf32>
    %167 = vector.shape_cast %166 : vector<8xf32> to vector<8x1xf32>
    %cst_103 = arith.constant 3.200000e+01 : f32
    %168 = vector.broadcast %cst_103 : f32 to vector<8x1xf32>
    %169 = arith.divf %167, %168 : vector<8x1xf32>
    %170 = vector.broadcast %162 : vector<8x1xf32> to vector<8x32xf32>
    %171 = arith.subf %154, %170 : vector<8x32xf32>
    %cst_104 = arith.constant 9.99999974E-6 : f32
    %172 = vector.broadcast %cst_104 : f32 to vector<8x1xf32>
    %173 = arith.addf %169, %172 : vector<8x1xf32>
    %174 = math.rsqrt %173 : vector<8x1xf32>
    %175 = vector.broadcast %174 : vector<8x1xf32> to vector<8x32xf32>
    %176 = arith.mulf %171, %175 : vector<8x32xf32>
    %177 = vector.broadcast %156 : vector<1x32xf32> to vector<8x32xf32>
    %178 = arith.mulf %176, %177 : vector<8x32xf32>
    %179 = vector.broadcast %158 : vector<1x32xf32> to vector<8x32xf32>
    %180 = arith.addf %178, %179 : vector<8x32xf32>
    %c0_105 = arith.constant 0 : index
    %c0_106 = arith.constant 0 : index
    %c0_107 = arith.constant 0 : index
    %181 = vector.load %arg17[%c0_105, %c0_106, %c0_107] : memref<1x8x32xf32, #tpu.memory_space<vmem>>, vector<1x8x32xf32>
    %182 = vector.shape_cast %181 : vector<1x8x32xf32> to vector<8x32xf32>
    %183 = vector.shape_cast %180 : vector<8x32xf32> to vector<1x8x32xf32>
    tpu.vector_store %arg17[%c0_105, %c0_106, %c0_107], %183 {strides = array<i32>} : memref<1x8x32xf32, #tpu.memory_space<vmem>>, vector<1x8x32xf32>,
    return
  }
  func.func @transform_0(%arg0: i32, %arg1: i32) -> (i32, i32, i32) {
    %c0_i32 = arith.constant 0 : i32
    %c0_i32_0 = arith.constant 0 : i32
    %c0_i32_1 = arith.constant 0 : i32
    return %arg0, %c0_i32, %c0_i32_0 : i32, i32, i32
  }
  func.func @transform_1(%arg0: i32, %arg1: i32) -> (i32, i32) {
    %c0_i32 = arith.constant 0 : i32
    %c0_i32_0 = arith.constant 0 : i32
    %c0_i32_1 = arith.constant 0 : i32
    return %c0_i32, %c0_i32_0 : i32, i32
  }
  func.func @transform_2(%arg0: i32, %arg1: i32) -> (i32, i32, i32) {
    %c0_i32 = arith.constant 0 : i32
    %c0_i32_0 = arith.constant 0 : i32
    %c0_i32_1 = arith.constant 0 : i32
    return %arg0, %c0_i32, %c0_i32_0 : i32, i32, i32
  }
  func.func @transform_3(%arg0: i32, %arg1: i32) -> (i32, i32, i32) {
    %c0_i32 = arith.constant 0 : i32
    %c0_i32_0 = arith.constant 0 : i32
    %c0_i32_1 = arith.constant 0 : i32
    return %arg1, %c0_i32, %c0_i32_0 : i32, i32, i32
  }
  func.func @transform_4(%arg0: i32, %arg1: i32) -> (i32, i32, i32) {
    %c0_i32 = arith.constant 0 : i32
    %c0_i32_0 = arith.constant 0 : i32
    %c0_i32_1 = arith.constant 0 : i32
    return %arg1, %c0_i32, %c0_i32_0 : i32, i32, i32
  }
  func.func @transform_5(%arg0: i32, %arg1: i32) -> (i32, i32, i32) {
    %c0_i32 = arith.constant 0 : i32
    %c0_i32_0 = arith.constant 0 : i32
    %c0_i32_1 = arith.constant 0 : i32
    return %arg1, %c0_i32, %c0_i32_0 : i32, i32, i32
  }
  func.func @transform_6(%arg0: i32, %arg1: i32) -> (i32, i32, i32) {
    %c0_i32 = arith.constant 0 : i32
    %c0_i32_0 = arith.constant 0 : i32
    %c0_i32_1 = arith.constant 0 : i32
    return %arg1, %c0_i32, %c0_i32_0 : i32, i32, i32
  }
  func.func @transform_7(%arg0: i32, %arg1: i32) -> (i32, i32, i32) {
    %c0_i32 = arith.constant 0 : i32
    %c0_i32_0 = arith.constant 0 : i32
    %c0_i32_1 = arith.constant 0 : i32
    return %arg1, %c0_i32, %c0_i32_0 : i32, i32, i32
  }
  func.func @transform_8(%arg0: i32, %arg1: i32) -> (i32, i32, i32) {
    %c0_i32 = arith.constant 0 : i32
    %c0_i32_0 = arith.constant 0 : i32
    %c0_i32_1 = arith.constant 0 : i32
    return %arg1, %c0_i32, %c0_i32_0 : i32, i32, i32
  }
  func.func @transform_9(%arg0: i32, %arg1: i32) -> (i32, i32, i32) {
    %c0_i32 = arith.constant 0 : i32
    %c0_i32_0 = arith.constant 0 : i32
    %c0_i32_1 = arith.constant 0 : i32
    return %arg1, %c0_i32, %c0_i32_0 : i32, i32, i32
  }
  func.func @transform_10(%arg0: i32, %arg1: i32) -> (i32, i32, i32) {
    %c0_i32 = arith.constant 0 : i32
    %c0_i32_0 = arith.constant 0 : i32
    %c0_i32_1 = arith.constant 0 : i32
    return %arg1, %c0_i32, %c0_i32_0 : i32, i32, i32
  }
  func.func @transform_11(%arg0: i32, %arg1: i32) -> (i32, i32, i32) {
    %c0_i32 = arith.constant 0 : i32
    %c0_i32_0 = arith.constant 0 : i32
    %c0_i32_1 = arith.constant 0 : i32
    return %arg1, %c0_i32, %c0_i32_0 : i32, i32, i32
  }
  func.func @transform_12(%arg0: i32, %arg1: i32) -> (i32, i32, i32) {
    %c0_i32 = arith.constant 0 : i32
    %c0_i32_0 = arith.constant 0 : i32
    %c0_i32_1 = arith.constant 0 : i32
    return %arg1, %c0_i32, %c0_i32_0 : i32, i32, i32
  }
  func.func @transform_13(%arg0: i32, %arg1: i32) -> (i32, i32, i32) {
    %c0_i32 = arith.constant 0 : i32
    %c0_i32_0 = arith.constant 0 : i32
    %c0_i32_1 = arith.constant 0 : i32
    return %arg1, %c0_i32, %c0_i32_0 : i32, i32, i32
  }
  func.func @transform_14(%arg0: i32, %arg1: i32) -> (i32, i32, i32) {
    %c0_i32 = arith.constant 0 : i32
    %c0_i32_0 = arith.constant 0 : i32
    %c0_i32_1 = arith.constant 0 : i32
    return %arg1, %c0_i32, %c0_i32_0 : i32, i32, i32
  }
  func.func @transform_15(%arg0: i32, %arg1: i32) -> (i32, i32, i32) {
    %c0_i32 = arith.constant 0 : i32
    %c0_i32_0 = arith.constant 0 : i32
    %c0_i32_1 = arith.constant 0 : i32
    return %arg0, %c0_i32, %c0_i32_0 : i32, i32, i32
  }
}

</mosaic_0001>

<llo_original>
// kernel: tpu_custom_call.1
$region0: #{tpu_custom_call.1}
  #allocation0 [shape = 'u32[]', space=smem, size = 0x4, offset = 0x4, fixed_abs, tag = 'smem constant byte address 0x4 - core index']
  #allocation1 [shape = 'u32[144,128]{1,0:T(1,128)}', space=vmem, size = 0x12000, scoped, tag = 'internal scratch']
  #allocation2 [shape = 'f32[8,96]{1,0:T(8,128)}', space=vmem, size = 0x1000, scoped, tag = 'scratch operand']
  #allocation3 [shape = 'f32[8,32]{1,0:T(8,128)}', space=vmem, size = 0x1000, scoped, tag = 'scratch operand']
  %s0 = inlined_call_operand.hbm [shape: f32[2,8,32], index: 0, kind: input, shape index: {}]
  %s1 = inlined_call_operand.hbm [shape: f32[8,32], index: 1, kind: input, shape index: {}]
  %s2 = inlined_call_operand.vmem [shape: f32[2,1,8], index: 2, kind: input, shape index: {}]
  %s3 = inlined_call_operand.vmem [shape: f32[2,32,96], index: 3, kind: input, shape index: {}]
  %s4 = inlined_call_operand.vmem [shape: f32[2,1,96], index: 4, kind: input, shape index: {}]
  %s5 = inlined_call_operand.vmem [shape: f32[2,32,32], index: 5, kind: input, shape index: {}]
  %s6 = inlined_call_operand.vmem [shape: f32[2,1,32], index: 6, kind: input, shape index: {}]
  %s7 = inlined_call_operand.vmem [shape: f32[2,1,32], index: 7, kind: input, shape index: {}]
  %s8 = inlined_call_operand.vmem [shape: f32[2,1,32], index: 8, kind: input, shape index: {}]
  %s9 = inlined_call_operand.vmem [shape: f32[2,32,64], index: 9, kind: input, shape index: {}]
  %s10 = inlined_call_operand.vmem [shape: f32[2,1,64], index: 10, kind: input, shape index: {}]
  %s11 = inlined_call_operand.vmem [shape: f32[2,64,32], index: 11, kind: input, shape index: {}]
  %s12 = inlined_call_operand.vmem [shape: f32[2,1,32], index: 12, kind: input, shape index: {}]
  %s13 = inlined_call_operand.vmem [shape: f32[2,1,32], index: 13, kind: input, shape index: {}]
  %s14 = inlined_call_operand.vmem [shape: f32[2,1,32], index: 14, kind: input, shape index: {}]
  %s15 = inlined_call_operand.hbm [shape: f32[2,8,32], index: 15, kind: output, shape index: {}]
  %s16 = sld [smem:[#allocation0]]
  $region105: #{tpu_custom_call.1} parent=0
    _
  %s18 = ssub.s32 1, %s16
  %s19 = scalar_select 0, %s18, %s16
  $region1: #{tpu_custom_call.1} parent=0
    #allocation4 [shape = 'u8[8192]{0}', space=vmem, size = 0x2000, scoped, tag = 'input window, operand 0']
    #allocation5 [shape = 's32[2]{0}', space=sflag, size = 0x8, scoped, tag = 'scoped memory for tpu_custom_call.1']
    #allocation6 [shape = 's32[2]{0}', space=sflag, size = 0x8, scoped, tag = 'scoped memory for tpu_custom_call.1']
    #allocation7 [shape = 'u8[4096]{0}', space=vmem, size = 0x1000, scoped, tag = 'input window, operand 1, single buffered']
    #allocation8 [shape = 's32[1]{0}', space=sflag, size = 0x4, scoped, tag = 'scoped memory for tpu_custom_call.1']
    #allocation9 [shape = 'u8[8192]{0}', space=vmem, size = 0x2000, scoped, tag = 'output window, operand 0']
    %20 = vsyncpa [#allocation5], 0
    %s21 = scalar_lea.sflag [#allocation5], 1
    %22 = vsyncpa %s21, 0
    %23 = vsyncpa [#allocation8], 0
    %24 = vsyncpa [#allocation6], 0
    %s25 = scalar_lea.sflag [#allocation6], 1
    %26 = vsyncpa %s25, 0
    loop: start=0, step=1, limit=6
    $region2: #{tpu_custom_call.1} parent=1 // loop_pre_header
      _
    $region3: #{tpu_custom_call.1} parent=1 // loop_header
      %s28 = sphi 0, %s32
      %p29 = scmp.ge.s32.totalorder %s28, 6
      %s35 = sphi 0, %s47
      %s36 = sphi 0, %s43
      %s37 = sphi 0, %s35
      %s38 = sphi 0, %s36
      %s39 = sphi 0, %s37
      %s40 = sphi 0, %s38
      %s50 = sphi 0, %s52
      %s53 = sphi 0, %s50
      %s54 = sphi 0, %s53
      %s70 = sphi 0, %s54
      %s74 = sphi 0, %s74
      %s76 = sphi 0, %s74
      %s77 = sphi 0, %s76
      %s91 = sphi 0, %s77
      %s97 = sphi 0, %s99
      %s100 = sphi 0, %s97
      %s101 = sphi 0, %s100
      %s117 = sphi 0, %s101
      %s123 = sphi 0, %s125
      %s126 = sphi 0, %s123
      %s127 = sphi 0, %s126
      %s143 = sphi 0, %s127
      %s149 = sphi 0, %s151
      %s152 = sphi 0, %s149
      %s153 = sphi 0, %s152
      %s169 = sphi 0, %s153
      %s175 = sphi 0, %s177
      %s178 = sphi 0, %s175
      %s179 = sphi 0, %s178
      %s195 = sphi 0, %s179
      %s201 = sphi 0, %s203
      %s204 = sphi 0, %s201
      %s205 = sphi 0, %s204
      %s221 = sphi 0, %s205
      %s227 = sphi 0, %s229
      %s230 = sphi 0, %s227
      %s231 = sphi 0, %s230
      %s247 = sphi 0, %s231
      %s253 = sphi 0, %s255
      %s256 = sphi 0, %s253
      %s257 = sphi 0, %s256
      %s273 = sphi 0, %s257
      %s279 = sphi 0, %s281
      %s282 = sphi 0, %s279
      %s283 = sphi 0, %s282
      %s299 = sphi 0, %s283
      %s305 = sphi 0, %s307
      %s308 = sphi 0, %s305
      %s309 = sphi 0, %s308
      %s325 = sphi 0, %s309
      %s331 = sphi 0, %s333
      %s334 = sphi 0, %s331
      %s335 = sphi 0, %s334
      %s351 = sphi 0, %s335
      %s357 = sphi 0, %s359
      %s360 = sphi 0, %s357
      %s361 = sphi 0, %s360
      %s377 = sphi 0, %s361
      %s383 = sphi 0, %s385
      %s386 = sphi 0, %s383
      %s387 = sphi 0, %s386
      %s403 = sphi 0, %s387
      %s409 = sphi 0, %s411
      %s412 = sphi 0, %s409
      %s413 = sphi 0, %s412
      %s429 = sphi 0, %s413
      %s435 = sphi 0, %s437
      %s438 = sphi 0, %s435
      %s439 = sphi 0, %s438
      %s455 = sphi 0, %s439
    $region4: #{tpu_custom_call.1} parent=1 // loop_header_branch
      %31 = sbr.rel (%p29) target = $region8
    $region5: #{tpu_custom_call.1} parent=1 // loop_body
      %s33 = ssub.s32 %s28, 1
      %s34 = ssub.s32 %s28, 2
      %s41 = sadd.s32 1, %s36
      %p42 = scmp.ge.s32.totalorder %s41, 2
      %s43 = scalar_select %p42, 0, %s41
      %s44 = sadd.s32 1, %s35
      %s45 = scalar_select %p42, %s44, %s35
      %p46 = scmp.ge.s32.totalorder %s45, 2
      %s47 = scalar_select %p46, 0, %s45
      %s48 = ssub.s32 %s35, %s47
      %p49 = scmp.eq.s32.totalorder %s48, 0
      %s51 = sadd.s32 %s50, 1
      %s52 = scalar_select %p49, %s50, %s51
      %p55 = pneg %p49
      %p56 = scmp.eq.s32.totalorder %s28, 3
      %p57 = por %p55, %p56
      %p58 = scmp.ne.s32.totalorder %s50, %s53
      %p59 = scmp.eq.s32.totalorder %s28, 0
      %p60 = por %p58, %p59
      %p61 = scmp.ne.s32.totalorder %s50, %s53
      %p62 = scmp.eq.s32.totalorder %s33, 3
      %p63 = por %p61, %p62
      %p64 = scmp.ne.s32.totalorder %s53, %s54
      %p65 = scmp.eq.s32.totalorder %s33, 0
      %p66 = por %p64, %p65
      %p67 = scmp.ne.s32.totalorder %s53, %s54
      %p68 = scmp.eq.s32.totalorder %s34, 3
      %p69 = por %p67, %p68
      %p71 = scmp.ne.s32.totalorder %s54, %s70
      %p72 = scmp.eq.s32.totalorder %s34, 0
      %p73 = por %p71, %p72
      %s75 = sadd.s32 %s74, 1
      %p78 = scmp.eq.s32.totalorder %s28, 3
      %p79 = scmp.ne.s32.totalorder %s74, %s76
      %p80 = scmp.eq.s32.totalorder %s28, 0
      %p81 = por %p79, %p80
      %p82 = scmp.ne.s32.totalorder %s74, %s76
      %p83 = scmp.eq.s32.totalorder %s33, 3
      %p84 = por %p82, %p83
      %p85 = scmp.ne.s32.totalorder %s76, %s77
      %p86 = scmp.eq.s32.totalorder %s33, 0
      %p87 = por %p85, %p86
      %p88 = scmp.ne.s32.totalorder %s76, %s77
      %p89 = scmp.eq.s32.totalorder %s34, 3
      %p90 = por %p88, %p89
      %p92 = scmp.ne.s32.totalorder %s77, %s91
      %p93 = scmp.eq.s32.totalorder %s34, 0
      %p94 = por %p92, %p93
      %s95 = ssub.s32 %s35, %s47
      %p96 = scmp.eq.s32.totalorder %s95, 0
      %s98 = sadd.s32 %s97, 1
      %s99 = scalar_select %p96, %s97, %s98
      %p102 = pneg %p96
      %p103 = scmp.eq.s32.totalorder %s28, 3
      %p104 = por %p102, %p103
      %p105 = scmp.ne.s32.totalorder %s97, %s100
      %p106 = scmp.eq.s32.totalorder %s28, 0
      %p107 = por %p105, %p106
      %p108 = scmp.ne.s32.totalorder %s97, %s100
      %p109 = scmp.eq.s32.totalorder %s33, 3
      %p110 = por %p108, %p109
      %p111 = scmp.ne.s32.totalorder %s100, %s101
      %p112 = scmp.eq.s32.totalorder %s33, 0
      %p113 = por %p111, %p112
      %p114 = scmp.ne.s32.totalorder %s100, %s101
      %p115 = scmp.eq.s32.totalorder %s34, 3
      %p116 = por %p114, %p115
      %p118 = scmp.ne.s32.totalorder %s101, %s117
      %p119 = scmp.eq.s32.totalorder %s34, 0
      %p120 = por %p118, %p119
      %s121 = ssub.s32 %s36, %s43
      %p122 = scmp.eq.s32.totalorder %s121, 0
      %s124 = sadd.s32 %s123, 1
      %s125 = scalar_select %p122, %s123, %s124
      %p128 = pneg %p122
      %p129 = scmp.eq.s32.totalorder %s28, 3
      %p130 = por %p128, %p129
      %p131 = scmp.ne.s32.totalorder %s123, %s126
      %p132 = scmp.eq.s32.totalorder %s28, 0
      %p133 = por %p131, %p132
      %p134 = scmp.ne.s32.totalorder %s123, %s126
      %p135 = scmp.eq.s32.totalorder %s33, 3
      %p136 = por %p134, %p135
      %p137 = scmp.ne.s32.totalorder %s126, %s127
      %p138 = scmp.eq.s32.totalorder %s33, 0
      %p139 = por %p137, %p138
      %p140 = scmp.ne.s32.totalorder %s126, %s127
      %p141 = scmp.eq.s32.totalorder %s34, 3
      %p142 = por %p140, %p141
      %p144 = scmp.ne.s32.totalorder %s127, %s143
      %p145 = scmp.eq.s32.totalorder %s34, 0
      %p146 = por %p144, %p145
      %s147 = ssub.s32 %s36, %s43
      %p148 = scmp.eq.s32.totalorder %s147, 0
      %s150 = sadd.s32 %s149, 1
      %s151 = scalar_select %p148, %s149, %s150
      %p154 = pneg %p148
      %p155 = scmp.eq.s32.totalorder %s28, 3
      %p156 = por %p154, %p155
      %p157 = scmp.ne.s32.totalorder %s149, %s152
      %p158 = scmp.eq.s32.totalorder %s28, 0
      %p159 = por %p157, %p158
      %p160 = scmp.ne.s32.totalorder %s149, %s152
      %p161 = scmp.eq.s32.totalorder %s33, 3
      %p162 = por %p160, %p161
      %p163 = scmp.ne.s32.totalorder %s152, %s153
      %p164 = scmp.eq.s32.totalorder %s33, 0
      %p165 = por %p163, %p164
      %p166 = scmp.ne.s32.totalorder %s152, %s153
      %p167 = scmp.eq.s32.totalorder %s34, 3
      %p168 = por %p166, %p167
      %p170 = scmp.ne.s32.totalorder %s153, %s169
      %p171 = scmp.eq.s32.totalorder %s34, 0
      %p172 = por %p170, %p171
      %s173 = ssub.s32 %s36, %s43
      %p174 = scmp.eq.s32.totalorder %s173, 0
      %s176 = sadd.s32 %s175, 1
      %s177 = scalar_select %p174, %s175, %s176
      %p180 = pneg %p174
      %p181 = scmp.eq.s32.totalorder %s28, 3
      %p182 = por %p180, %p181
      %p183 = scmp.ne.s32.totalorder %s175, %s178
      %p184 = scmp.eq.s32.totalorder %s28, 0
      %p185 = por %p183, %p184
      %p186 = scmp.ne.s32.totalorder %s175, %s178
      %p187 = scmp.eq.s32.totalorder %s33, 3
      %p188 = por %p186, %p187
      %p189 = scmp.ne.s32.totalorder %s178, %s179
      %p190 = scmp.eq.s32.totalorder %s33, 0
      %p191 = por %p189, %p190
      %p192 = scmp.ne.s32.totalorder %s178, %s179
      %p193 = scmp.eq.s32.totalorder %s34, 3
      %p194 = por %p192, %p193
      %p196 = scmp.ne.s32.totalorder %s179, %s195
      %p197 = scmp.eq.s32.totalorder %s34, 0
      %p198 = por %p196, %p197
      %s199 = ssub.s32 %s36, %s43
      %p200 = scmp.eq.s32.totalorder %s199, 0
      %s202 = sadd.s32 %s201, 1
      %s203 = scalar_select %p200, %s201, %s202
      %p206 = pneg %p200
      %p207 = scmp.eq.s32.totalorder %s28, 3
      %p208 = por %p206, %p207
      %p209 = scmp.ne.s32.totalorder %s201, %s204
      %p210 = scmp.eq.s32.totalorder %s28, 0
      %p211 = por %p209, %p210
      %p212 = scmp.ne.s32.totalorder %s201, %s204
      %p213 = scmp.eq.s32.totalorder %s33, 3
      %p214 = por %p212, %p213
      %p215 = scmp.ne.s32.totalorder %s204, %s205
      %p216 = scmp.eq.s32.totalorder %s33, 0
      %p217 = por %p215, %p216
      %p218 = scmp.ne.s32.totalorder %s204, %s205
      %p219 = scmp.eq.s32.totalorder %s34, 3
      %p220 = por %p218, %p219
      %p222 = scmp.ne.s32.totalorder %s205, %s221
      %p223 = scmp.eq.s32.totalorder %s34, 0
      %p224 = por %p222, %p223
      %s225 = ssub.s32 %s36, %s43
      %p226 = scmp.eq.s32.totalorder %s225, 0
      %s228 = sadd.s32 %s227, 1
      %s229 = scalar_select %p226, %s227, %s228
      %p232 = pneg %p226
      %p233 = scmp.eq.s32.totalorder %s28, 3
      %p234 = por %p232, %p233
      %p235 = scmp.ne.s32.totalorder %s227, %s230
      %p236 = scmp.eq.s32.totalorder %s28, 0
      %p237 = por %p235, %p236
      %p238 = scmp.ne.s32.totalorder %s227, %s230
      %p239 = scmp.eq.s32.totalorder %s33, 3
      %p240 = por %p238, %p239
      %p241 = scmp.ne.s32.totalorder %s230, %s231
      %p242 = scmp.eq.s32.totalorder %s33, 0
      %p243 = por %p241, %p242
      %p244 = scmp.ne.s32.totalorder %s230, %s231
      %p245 = scmp.eq.s32.totalorder %s34, 3
      %p246 = por %p244, %p245
      %p248 = scmp.ne.s32.totalorder %s231, %s247
      %p249 = scmp.eq.s32.totalorder %s34, 0
      %p250 = por %p248, %p249
      %s251 = ssub.s32 %s36, %s43
      %p252 = scmp.eq.s32.totalorder %s251, 0
      %s254 = sadd.s32 %s253, 1
      %s255 = scalar_select %p252, %s253, %s254
      %p258 = pneg %p252
      %p259 = scmp.eq.s32.totalorder %s28, 3
      %p260 = por %p258, %p259
      %p261 = scmp.ne.s32.totalorder %s253, %s256
      %p262 = scmp.eq.s32.totalorder %s28, 0
      %p263 = por %p261, %p262
      %p264 = scmp.ne.s32.totalorder %s253, %s256
      %p265 = scmp.eq.s32.totalorder %s33, 3
      %p266 = por %p264, %p265
      %p267 = scmp.ne.s32.totalorder %s256, %s257
      %p268 = scmp.eq.s32.totalorder %s33, 0
      %p269 = por %p267, %p268
      %p270 = scmp.ne.s32.totalorder %s256, %s257
      %p271 = scmp.eq.s32.totalorder %s34, 3
      %p272 = por %p270, %p271
      %p274 = scmp.ne.s32.totalorder %s257, %s273
      %p275 = scmp.eq.s32.totalorder %s34, 0
      %p276 = por %p274, %p275
      %s277 = ssub.s32 %s36, %s43
      %p278 = scmp.eq.s32.totalorder %s277, 0
      %s280 = sadd.s32 %s279, 1
      %s281 = scalar_select %p278, %s279, %s280
      %p284 = pneg %p278
      %p285 = scmp.eq.s32.totalorder %s28, 3
      %p286 = por %p284, %p285
      %p287 = scmp.ne.s32.totalorder %s279, %s282
      %p288 = scmp.eq.s32.totalorder %s28, 0
      %p289 = por %p287, %p288
      %p290 = scmp.ne.s32.totalorder %s279, %s282
      %p291 = scmp.eq.s32.totalorder %s33, 3
      %p292 = por %p290, %p291
      %p293 = scmp.ne.s32.totalorder %s282, %s283
      %p294 = scmp.eq.s32.totalorder %s33, 0
      %p295 = por %p293, %p294
      %p296 = scmp.ne.s32.totalorder %s282, %s283
      %p297 = scmp.eq.s32.totalorder %s34, 3
      %p298 = por %p296, %p297
      %p300 = scmp.ne.s32.totalorder %s283, %s299
      %p301 = scmp.eq.s32.totalorder %s34, 0
      %p302 = por %p300, %p301
      %s303 = ssub.s32 %s36, %s43
      %p304 = scmp.eq.s32.totalorder %s303, 0
      %s306 = sadd.s32 %s305, 1
      %s307 = scalar_select %p304, %s305, %s306
      %p310 = pneg %p304
      %p311 = scmp.eq.s32.totalorder %s28, 3
      %p312 = por %p310, %p311
      %p313 = scmp.ne.s32.totalorder %s305, %s308
      %p314 = scmp.eq.s32.totalorder %s28, 0
      %p315 = por %p313, %p314
      %p316 = scmp.ne.s32.totalorder %s305, %s308
      %p317 = scmp.eq.s32.totalorder %s33, 3
      %p318 = por %p316, %p317
      %p319 = scmp.ne.s32.totalorder %s308, %s309
      %p320 = scmp.eq.s32.totalorder %s33, 0
      %p321 = por %p319, %p320
      %p322 = scmp.ne.s32.totalorder %s308, %s309
      %p323 = scmp.eq.s32.totalorder %s34, 3
      %p324 = por %p322, %p323
      %p326 = scmp.ne.s32.totalorder %s309, %s325
      %p327 = scmp.eq.s32.totalorder %s34, 0
      %p328 = por %p326, %p327
      %s329 = ssub.s32 %s36, %s43
      %p330 = scmp.eq.s32.totalorder %s329, 0
      %s332 = sadd.s32 %s331, 1
      %s333 = scalar_select %p330, %s331, %s332
      %p336 = pneg %p330
      %p337 = scmp.eq.s32.totalorder %s28, 3
      %p338 = por %p336, %p337
      %p339 = scmp.ne.s32.totalorder %s331, %s334
      %p340 = scmp.eq.s32.totalorder %s28, 0
      %p341 = por %p339, %p340
      %p342 = scmp.ne.s32.totalorder %s331, %s334
      %p343 = scmp.eq.s32.totalorder %s33, 3
      %p344 = por %p342, %p343
      %p345 = scmp.ne.s32.totalorder %s334, %s335
      %p346 = scmp.eq.s32.totalorder %s33, 0
      %p347 = por %p345, %p346
      %p348 = scmp.ne.s32.totalorder %s334, %s335
      %p349 = scmp.eq.s32.totalorder %s34, 3
      %p350 = por %p348, %p349
      %p352 = scmp.ne.s32.totalorder %s335, %s351
      %p353 = scmp.eq.s32.totalorder %s34, 0
      %p354 = por %p352, %p353
      %s355 = ssub.s32 %s36, %s43
      %p356 = scmp.eq.s32.totalorder %s355, 0
      %s358 = sadd.s32 %s357, 1
      %s359 = scalar_select %p356, %s357, %s358
      %p362 = pneg %p356
      %p363 = scmp.eq.s32.totalorder %s28, 3
      %p364 = por %p362, %p363
      %p365 = scmp.ne.s32.totalorder %s357, %s360
      %p366 = scmp.eq.s32.totalorder %s28, 0
      %p367 = por %p365, %p366
      %p368 = scmp.ne.s32.totalorder %s357, %s360
      %p369 = scmp.eq.s32.totalorder %s33, 3
      %p370 = por %p368, %p369
      %p371 = scmp.ne.s32.totalorder %s360, %s361
      %p372 = scmp.eq.s32.totalorder %s33, 0
      %p373 = por %p371, %p372
      %p374 = scmp.ne.s32.totalorder %s360, %s361
      %p375 = scmp.eq.s32.totalorder %s34, 3
      %p376 = por %p374, %p375
      %p378 = scmp.ne.s32.totalorder %s361, %s377
      %p379 = scmp.eq.s32.totalorder %s34, 0
      %p380 = por %p378, %p379
      %s381 = ssub.s32 %s36, %s43
      %p382 = scmp.eq.s32.totalorder %s381, 0
      %s384 = sadd.s32 %s383, 1
      %s385 = scalar_select %p382, %s383, %s384
      %p388 = pneg %p382
      %p389 = scmp.eq.s32.totalorder %s28, 3
      %p390 = por %p388, %p389
      %p391 = scmp.ne.s32.totalorder %s383, %s386
      %p392 = scmp.eq.s32.totalorder %s28, 0
      %p393 = por %p391, %p392
      %p394 = scmp.ne.s32.totalorder %s383, %s386
      %p395 = scmp.eq.s32.totalorder %s33, 3
      %p396 = por %p394, %p395
      %p397 = scmp.ne.s32.totalorder %s386, %s387
      %p398 = scmp.eq.s32.totalorder %s33, 0
      %p399 = por %p397, %p398
      %p400 = scmp.ne.s32.totalorder %s386, %s387
      %p401 = scmp.eq.s32.totalorder %s34, 3
      %p402 = por %p400, %p401
      %p404 = scmp.ne.s32.totalorder %s387, %s403
      %p405 = scmp.eq.s32.totalorder %s34, 0
      %p406 = por %p404, %p405
      %s407 = ssub.s32 %s36, %s43
      %p408 = scmp.eq.s32.totalorder %s407, 0
      %s410 = sadd.s32 %s409, 1
      %s411 = scalar_select %p408, %s409, %s410
      %p414 = pneg %p408
      %p415 = scmp.eq.s32.totalorder %s28, 3
      %p416 = por %p414, %p415
      %p417 = scmp.ne.s32.totalorder %s409, %s412
      %p418 = scmp.eq.s32.totalorder %s28, 0
      %p419 = por %p417, %p418
      %p420 = scmp.ne.s32.totalorder %s409, %s412
      %p421 = scmp.eq.s32.totalorder %s33, 3
      %p422 = por %p420, %p421
      %p423 = scmp.ne.s32.totalorder %s412, %s413
      %p424 = scmp.eq.s32.totalorder %s33, 0
      %p425 = por %p423, %p424
      %p426 = scmp.ne.s32.totalorder %s412, %s413
      %p427 = scmp.eq.s32.totalorder %s34, 3
      %p428 = por %p426, %p427
      %p430 = scmp.ne.s32.totalorder %s413, %s429
      %p431 = scmp.eq.s32.totalorder %s34, 0
      %p432 = por %p430, %p431
      %s433 = ssub.s32 %s35, %s47
      %p434 = scmp.eq.s32.totalorder %s433, 0
      %s436 = sadd.s32 %s435, 1
      %s437 = scalar_select %p434, %s435, %s436
      %p440 = pneg %p434
      %p441 = scmp.eq.s32.totalorder %s28, 3
      %p442 = por %p440, %p441
      %p443 = scmp.ne.s32.totalorder %s435, %s438
      %p444 = scmp.eq.s32.totalorder %s28, 0
      %p445 = por %p443, %p444
      %p446 = scmp.ne.s32.totalorder %s435, %s438
      %p447 = scmp.eq.s32.totalorder %s33, 3
      %p448 = por %p446, %p447
      %p449 = scmp.ne.s32.totalorder %s438, %s439
      %p450 = scmp.eq.s32.totalorder %s33, 0
      %p451 = por %p449, %p450
      %p452 = scmp.ne.s32.totalorder %s438, %s439
      %p453 = scmp.eq.s32.totalorder %s34, 3
      %p454 = por %p452, %p453
      %p456 = scmp.ne.s32.totalorder %s439, %s455
      %p457 = scmp.eq.s32.totalorder %s34, 0
      %p458 = por %p456, %p457
      %p459 = scmp.le.s32.totalorder 1, %s28
      %p460 = scmp.lt.s32.totalorder %s28, 5
      %p461 = pnand %p459, %p460
      %p462 = pneg %p461
      // Predicated region
      $region9: #{tpu_custom_call.1} parent=5 // pred_check
        _
      $region10: #{tpu_custom_call.1} parent=5 // pred_check_branch
        %464 = sbr.rel (%p461) target = $region12
      $region11: #{tpu_custom_call.1} parent=5 // pred_region
        %s465 = ssub.s32 %s28, 1
        // Predicated region
        $region13: #{tpu_custom_call.1} parent=11 // pred_check
          %p466 = pneg %p87
        $region14: #{tpu_custom_call.1} parent=11 // pred_check_branch
          %468 = sbr.rel (%p466) target = $region16
        $region15: #{tpu_custom_call.1} parent=11 // pred_region
          %s470 = ssub.s32 128, 128
          %471 = vsyncadd [#allocation8], %s470
          %s473 = sshll.u32 [#allocation7], 4
          %s474 = int_to_ptr.vmem [resolvable:$true] %s473
          %476 = dma.hbm_to_vmem [thread:$0]  %s1, 128, %s474, [#allocation8]
        $region16: #{tpu_custom_call.1} parent=11 // pred_fallthru
          _
      $region12: #{tpu_custom_call.1} parent=5 // pred_fallthru
        _
      %p477 = scmp.lt.s32.totalorder %s28, 4
      // Predicated region
      $region17: #{tpu_custom_call.1} parent=5 // pred_check
        %p478 = pneg %p477
      $region18: #{tpu_custom_call.1} parent=5 // pred_check_branch
        %480 = sbr.rel (%p478) target = $region20
      $region19: #{tpu_custom_call.1} parent=5 // pred_region
        // Predicated region
        $region21: #{tpu_custom_call.1} parent=19 // pred_check
          %p481 = pneg %p60
        $region22: #{tpu_custom_call.1} parent=19 // pred_check_branch
          %483 = sbr.rel (%p481) target = $region24
        $region23: #{tpu_custom_call.1} parent=19 // pred_region
          %s484 = sand.u32 %s50, 1
          %s485 = scalar_lea.sflag [#allocation5], %s484
          %s486 = sand.u32 %s50, 1
          %s487 = smul.addr %s486, 8
          %s488 = scalar_lea.vmem [#allocation4], %s487
          %s490 = ssub.s32 128, 128
          %491 = vsyncadd %s485, %s490
          %s492 = smul.addr %s35, 128
          %s493 = scalar_lea.hbm %s0, %s492
          %s495 = sshll.u32 %s488, 4
          %s496 = int_to_ptr.vmem [resolvable:$true] %s495
          %498 = dma.hbm_to_vmem [thread:$0]  %s493, 128, %s496, %s485
        $region24: #{tpu_custom_call.1} parent=19 // pred_fallthru
          _
        // Predicated region
        $region25: #{tpu_custom_call.1} parent=19 // pred_check
          %p499 = pneg %p107
        $region26: #{tpu_custom_call.1} parent=19 // pred_check_branch
          %501 = sbr.rel (%p499) target = $region28
        $region27: #{tpu_custom_call.1} parent=19 // pred_region
          %p502 = scmp.lt.s32.totalorder %s35, 1
          %s503 = scalar_select %p502, %s35, 1
          %s504 = scalar_lea.vmem %s2, %s503
        $region28: #{tpu_custom_call.1} parent=19 // pred_fallthru
          _
        // Predicated region
        $region29: #{tpu_custom_call.1} parent=19 // pred_check
          %p505 = pneg %p133
        $region30: #{tpu_custom_call.1} parent=19 // pred_check_branch
          %507 = sbr.rel (%p505) target = $region32
        $region31: #{tpu_custom_call.1} parent=19 // pred_region
          %p508 = scmp.lt.s32.totalorder %s36, 1
          %s509 = scalar_select %p508, %s36, 1
          %s510 = smul.addr %s509, 4
          %s511 = smul.addr %s510, 8
          %s512 = scalar_lea.vmem %s3, %s511
        $region32: #{tpu_custom_call.1} parent=19 // pred_fallthru
          _
        // Predicated region
        $region33: #{tpu_custom_call.1} parent=19 // pred_check
          %p513 = pneg %p159
        $region34: #{tpu_custom_call.1} parent=19 // pred_check_branch
          %515 = sbr.rel (%p513) target = $region36
        $region35: #{tpu_custom_call.1} parent=19 // pred_region
          %p516 = scmp.lt.s32.totalorder %s36, 1
          %s517 = scalar_select %p516, %s36, 1
          %s518 = scalar_lea.vmem %s4, %s517
        $region36: #{tpu_custom_call.1} parent=19 // pred_fallthru
          _
        // Predicated region
        $region37: #{tpu_custom_call.1} parent=19 // pred_check
          %p519 = pneg %p185
        $region38: #{tpu_custom_call.1} parent=19 // pred_check_branch
          %521 = sbr.rel (%p519) target = $region40
        $region39: #{tpu_custom_call.1} parent=19 // pred_region
          %p522 = scmp.lt.s32.totalorder %s36, 1
          %s523 = scalar_select %p522, %s36, 1
          %s524 = smul.addr %s523, 4
          %s525 = smul.addr %s524, 8
          %s526 = scalar_lea.vmem %s5, %s525
        $region40: #{tpu_custom_call.1} parent=19 // pred_fallthru
          _
        // Predicated region
        $region41: #{tpu_custom_call.1} parent=19 // pred_check
          %p527 = pneg %p211
        $region42: #{tpu_custom_call.1} parent=19 // pred_check_branch
          %529 = sbr.rel (%p527) target = $region44
        $region43: #{tpu_custom_call.1} parent=19 // pred_region
          %p530 = scmp.lt.s32.totalorder %s36, 1
          %s531 = scalar_select %p530, %s36, 1
          %s532 = scalar_lea.vmem %s6, %s531
        $region44: #{tpu_custom_call.1} parent=19 // pred_fallthru
          _
        // Predicated region
        $region45: #{tpu_custom_call.1} parent=19 // pred_check
          %p533 = pneg %p237
        $region46: #{tpu_custom_call.1} parent=19 // pred_check_branch
          %535 = sbr.rel (%p533) target = $region48
        $region47: #{tpu_custom_call.1} parent=19 // pred_region
          %p536 = scmp.lt.s32.totalorder %s36, 1
          %s537 = scalar_select %p536, %s36, 1
          %s538 = scalar_lea.vmem %s7, %s537
        $region48: #{tpu_custom_call.1} parent=19 // pred_fallthru
          _
        // Predicated region
        $region49: #{tpu_custom_call.1} parent=19 // pred_check
          %p539 = pneg %p263
        $region50: #{tpu_custom_call.1} parent=19 // pred_check_branch
          %541 = sbr.rel (%p539) target = $region52
        $region51: #{tpu_custom_call.1} parent=19 // pred_region
          %p542 = scmp.lt.s32.totalorder %s36, 1
          %s543 = scalar_select %p542, %s36, 1
          %s544 = scalar_lea.vmem %s8, %s543
        $region52: #{tpu_custom_call.1} parent=19 // pred_fallthru
          _
        // Predicated region
        $region53: #{tpu_custom_call.1} parent=19 // pred_check
          %p545 = pneg %p289
        $region54: #{tpu_custom_call.1} parent=19 // pred_check_branch
          %547 = sbr.rel (%p545) target = $region56
        $region55: #{tpu_custom_call.1} parent=19 // pred_region
          %p548 = scmp.lt.s32.totalorder %s36, 1
          %s549 = scalar_select %p548, %s36, 1
          %s550 = smul.addr %s549, 4
          %s551 = smul.addr %s550, 8
          %s552 = scalar_lea.vmem %s9, %s551
        $region56: #{tpu_custom_call.1} parent=19 // pred_fallthru
          _
        // Predicated region
        $region57: #{tpu_custom_call.1} parent=19 // pred_check
          %p553 = pneg %p315
        $region58: #{tpu_custom_call.1} parent=19 // pred_check_branch
          %555 = sbr.rel (%p553) target = $region60
        $region59: #{tpu_custom_call.1} parent=19 // pred_region
          %p556 = scmp.lt.s32.totalorder %s36, 1
          %s557 = scalar_select %p556, %s36, 1
          %s558 = scalar_lea.vmem %s10, %s557
        $region60: #{tpu_custom_call.1} parent=19 // pred_fallthru
          _
        // Predicated region
        $region61: #{tpu_custom_call.1} parent=19 // pred_check
          %p559 = pneg %p341
        $region62: #{tpu_custom_call.1} parent=19 // pred_check_branch
          %561 = sbr.rel (%p559) target = $region64
        $region63: #{tpu_custom_call.1} parent=19 // pred_region
          %p562 = scmp.lt.s32.totalorder %s36, 1
          %s563 = scalar_select %p562, %s36, 1
          %s564 = smul.addr %s563, 8
          %s565 = smul.addr %s564, 8
          %s566 = scalar_lea.vmem %s11, %s565
        $region64: #{tpu_custom_call.1} parent=19 // pred_fallthru
          _
        // Predicated region
        $region65: #{tpu_custom_call.1} parent=19 // pred_check
          %p567 = pneg %p367
        $region66: #{tpu_custom_call.1} parent=19 // pred_check_branch
          %569 = sbr.rel (%p567) target = $region68
        $region67: #{tpu_custom_call.1} parent=19 // pred_region
          %p570 = scmp.lt.s32.totalorder %s36, 1
          %s571 = scalar_select %p570, %s36, 1
          %s572 = scalar_lea.vmem %s12, %s571
        $region68: #{tpu_custom_call.1} parent=19 // pred_fallthru
          _
        // Predicated region
        $region69: #{tpu_custom_call.1} parent=19 // pred_check
          %p573 = pneg %p393
        $region70: #{tpu_custom_call.1} parent=19 // pred_check_branch
          %575 = sbr.rel (%p573) target = $region72
        $region71: #{tpu_custom_call.1} parent=19 // pred_region
          %p576 = scmp.lt.s32.totalorder %s36, 1
          %s577 = scalar_select %p576, %s36, 1
          %s578 = scalar_lea.vmem %s13, %s577
        $region72: #{tpu_custom_call.1} parent=19 // pred_fallthru
          _
        // Predicated region
        $region73: #{tpu_custom_call.1} parent=19 // pred_check
          %p579 = pneg %p419
        $region74: #{tpu_custom_call.1} parent=19 // pred_check_branch
          %581 = sbr.rel (%p579) target = $region76
        $region75: #{tpu_custom_call.1} parent=19 // pred_region
          %p582 = scmp.lt.s32.totalorder %s36, 1
          %s583 = scalar_select %p582, %s36, 1
          %s584 = scalar_lea.vmem %s14, %s583
        $region76: #{tpu_custom_call.1} parent=19 // pred_fallthru
          _
      $region20: #{tpu_custom_call.1} parent=5 // pred_fallthru
        _
      %p585 = scmp.le.s32.totalorder 1, %s28
      %p586 = scmp.lt.s32.totalorder %s28, 5
      %p587 = pnand %p585, %p586
      %p588 = pneg %p587
      // Predicated region
      $region77: #{tpu_custom_call.1} parent=5 // pred_check
        _
      $region78: #{tpu_custom_call.1} parent=5 // pred_check_branch
        %590 = sbr.rel (%p587) target = $region80
      $region79: #{tpu_custom_call.1} parent=5 // pred_region
        %s591 = ssub.s32 %s28, 1
        %s592 = sand.u32 %s53, 1
        %s593 = scalar_lea.sflag [#allocation5], %s592
        %s594 = sand.u32 %s53, 1
        %s595 = smul.addr %s594, 8
        %s596 = scalar_lea.vmem [#allocation4], %s595
        // Predicated region
        $region81: #{tpu_custom_call.1} parent=79 // pred_check
          %p597 = pneg %p66
        $region82: #{tpu_custom_call.1} parent=79 // pred_check_branch
          %599 = sbr.rel (%p597) target = $region84
        $region83: #{tpu_custom_call.1} parent=79 // pred_region
          %600 = dma.done %s593, 128
        $region84: #{tpu_custom_call.1} parent=79 // pred_fallthru
          _
        // Predicated region
        $region85: #{tpu_custom_call.1} parent=79 // pred_check
          %p601 = pneg %p87
        $region86: #{tpu_custom_call.1} parent=79 // pred_check_branch
          %603 = sbr.rel (%p601) target = $region88
        $region87: #{tpu_custom_call.1} parent=79 // pred_region
          %604 = dma.done [#allocation8], 128
        $region88: #{tpu_custom_call.1} parent=79 // pred_fallthru
          _
        %s605 = sand.u32 %s53, 1
        %s606 = scalar_lea.sflag [#allocation5], %s605
        %s607 = sand.u32 %s53, 1
        %s608 = smul.addr %s607, 8
        %s609 = scalar_lea.vmem [#allocation4], %s608
        %p610 = pneg %p66
        %p611 = pneg %p63
        %p612 = pneg %p87
        %p613 = pneg %p84
        %p614 = scmp.lt.s32.totalorder %s37, 1
        %s615 = scalar_select %p614, %s37, 1
        %s616 = scalar_lea.vmem %s2, %s615
        %p617 = pneg %p113
        %p618 = pneg %p110
        %p619 = scmp.lt.s32.totalorder %s38, 1
        %s620 = scalar_select %p619, %s38, 1
        %s621 = smul.addr %s620, 4
        %s622 = smul.addr %s621, 8
        %s623 = scalar_lea.vmem %s3, %s622
        %p624 = pneg %p139
        %p625 = pneg %p136
        %p626 = scmp.lt.s32.totalorder %s38, 1
        %s627 = scalar_select %p626, %s38, 1
        %s628 = scalar_lea.vmem %s4, %s627
        %p629 = pneg %p165
        %p630 = pneg %p162
        %p631 = scmp.lt.s32.totalorder %s38, 1
        %s632 = scalar_select %p631, %s38, 1
        %s633 = smul.addr %s632, 4
        %s634 = smul.addr %s633, 8
        %s635 = scalar_lea.vmem %s5, %s634
        %p636 = pneg %p191
        %p637 = pneg %p188
        %p638 = scmp.lt.s32.totalorder %s38, 1
        %s639 = scalar_select %p638, %s38, 1
        %s640 = scalar_lea.vmem %s6, %s639
        %p641 = pneg %p217
        %p642 = pneg %p214
        %p643 = scmp.lt.s32.totalorder %s38, 1
        %s644 = scalar_select %p643, %s38, 1
        %s645 = scalar_lea.vmem %s7, %s644
        %p646 = pneg %p243
        %p647 = pneg %p240
        %p648 = scmp.lt.s32.totalorder %s38, 1
        %s649 = scalar_select %p648, %s38, 1
        %s650 = scalar_lea.vmem %s8, %s649
        %p651 = pneg %p269
        %p652 = pneg %p266
        %p653 = scmp.lt.s32.totalorder %s38, 1
        %s654 = scalar_select %p653, %s38, 1
        %s655 = smul.addr %s654, 4
        %s656 = smul.addr %s655, 8
        %s657 = scalar_lea.vmem %s9, %s656
        %p658 = pneg %p295
        %p659 = pneg %p292
        %p660 = scmp.lt.s32.totalorder %s38, 1
        %s661 = scalar_select %p660, %s38, 1
        %s662 = scalar_lea.vmem %s10, %s661
        %p663 = pneg %p321
        %p664 = pneg %p318
        %p665 = scmp.lt.s32.totalorder %s38, 1
        %s666 = scalar_select %p665, %s38, 1
        %s667 = smul.addr %s666, 8
        %s668 = smul.addr %s667, 8
        %s669 = scalar_lea.vmem %s11, %s668
        %p670 = pneg %p347
        %p671 = pneg %p344
        %p672 = scmp.lt.s32.totalorder %s38, 1
        %s673 = scalar_select %p672, %s38, 1
        %s674 = scalar_lea.vmem %s12, %s673
        %p675 = pneg %p373
        %p676 = pneg %p370
        %p677 = scmp.lt.s32.totalorder %s38, 1
        %s678 = scalar_select %p677, %s38, 1
        %s679 = scalar_lea.vmem %s13, %s678
        %p680 = pneg %p399
        %p681 = pneg %p396
        %p682 = scmp.lt.s32.totalorder %s38, 1
        %s683 = scalar_select %p682, %s38, 1
        %s684 = scalar_lea.vmem %s14, %s683
        %p685 = pneg %p425
        %p686 = pneg %p422
        %p687 = pneg %p451
        %p688 = pneg %p448
        %s689 = sand.u32 %s438, 1
        %s690 = scalar_lea.sflag [#allocation6], %s689
        %s691 = sand.u32 %s438, 1
        %s692 = smul.addr %s691, 8
        %s693 = scalar_lea.vmem [#allocation9], %s692
        %p694 = scmp.lt.s32.totalorder %s37, 1
        %s695 = scalar_select %p694, %s37, 1
        %s696 = scalar_lea.vmem %s2, %s695
        %p697 = scmp.lt.s32.totalorder %s38, 1
        %s698 = scalar_select %p697, %s38, 1
        %s699 = smul.addr %s698, 4
        %s700 = smul.addr %s699, 8
        %s701 = scalar_lea.vmem %s3, %s700
        %p702 = scmp.lt.s32.totalorder %s38, 1
        %s703 = scalar_select %p702, %s38, 1
        %s704 = scalar_lea.vmem %s4, %s703
        %p705 = scmp.lt.s32.totalorder %s38, 1
        %s706 = scalar_select %p705, %s38, 1
        %s707 = smul.addr %s706, 4
        %s708 = smul.addr %s707, 8
        %s709 = scalar_lea.vmem %s5, %s708
        %p710 = scmp.lt.s32.totalorder %s38, 1
        %s711 = scalar_select %p710, %s38, 1
        %s712 = scalar_lea.vmem %s6, %s711
        %p713 = scmp.lt.s32.totalorder %s38, 1
        %s714 = scalar_select %p713, %s38, 1
        %s715 = scalar_lea.vmem %s7, %s714
        %p716 = scmp.lt.s32.totalorder %s38, 1
        %s717 = scalar_select %p716, %s38, 1
        %s718 = scalar_lea.vmem %s8, %s717
        %p719 = scmp.lt.s32.totalorder %s38, 1
        %s720 = scalar_select %p719, %s38, 1
        %s721 = smul.addr %s720, 4
        %s722 = smul.addr %s721, 8
        %s723 = scalar_lea.vmem %s9, %s722
        %p724 = scmp.lt.s32.totalorder %s38, 1
        %s725 = scalar_select %p724, %s38, 1
        %s726 = scalar_lea.vmem %s10, %s725
        %p727 = scmp.lt.s32.totalorder %s38, 1
        %s728 = scalar_select %p727, %s38, 1
        %s729 = smul.addr %s728, 8
        %s730 = smul.addr %s729, 8
        %s731 = scalar_lea.vmem %s11, %s730
        %p732 = scmp.lt.s32.totalorder %s38, 1
        %s733 = scalar_select %p732, %s38, 1
        %s734 = scalar_lea.vmem %s12, %s733
        %p735 = scmp.lt.s32.totalorder %s38, 1
        %s736 = scalar_select %p735, %s38, 1
        %s737 = scalar_lea.vmem %s13, %s736
        %p738 = scmp.lt.s32.totalorder %s38, 1
        %s739 = scalar_select %p738, %s38, 1
        %s740 = scalar_lea.vmem %s14, %s739
        %p741 = scmp.eq.s32.totalorder %s38, 0
        // Predicated region
        $region89: #{tpu_custom_call.1} parent=79 // pred_check
          %p742 = pneg %p741
        $region90: #{tpu_custom_call.1} parent=79 // pred_check_branch
          %744 = sbr.rel (%p742) target = $region92
        $region91: #{tpu_custom_call.1} parent=79 // pred_region
          %v745 = vld [vmem:[%s596] sm:$0xff]
          %v746 = vmul.f32 %v745, 5.656854
          %v747 = vld [vmem:[#allocation7] sm:$0xff]
          %v748 = vadd.f32 %v746, %v747
          %vm749 = vcmask 261120
          %750 = vst.msk [vmem:[%s693] sm:$0xff] %vm749, %v748
        $region92: #{tpu_custom_call.1} parent=79 // pred_fallthru
          _
        %v751 = vld [vmem:[%s693] sm:$0xff]
        %v752 = vld [vmem:[%s696] sm:$0x1]
        %v753 = vld [vmem:[%s701] sm:$0xff]
        %v754 = vld [vmem:[%s701 + $0x8] sm:$0xff]
        %v755 = vld [vmem:[%s701 + $0x10] sm:$0xff]
        %v756 = vld [vmem:[%s701 + $0x18] sm:$0xff]
        %v757 = vld [vmem:[%s704] sm:$0x1]
        %v759 = vlaneseq
        %v760 = vshrl.u32 %v759, 7
        %v761 = vsub.s32 0, %v760
        %v762 = vrot.slane %v757, %v761
        %vm764 = vcmask 261120
        %v766 = vsel %vm764, %v751, 0
        %768 = vmatprep.subr.mxu0 0.0
        %769 = vmatpush1.msra.mxu0 0.0
        %770 = vmatprep.subr.mxu0 0.0
        %771 = vmatpush1.msra.mxu0 0.0
        %772 = vmatprep.subr.mxu0 0.0
        %773 = vmatpush1.msra.mxu0 0.0
        %774 = vmatprep.subr.mxu0 0.0
        %775 = vmatpush1.msra.mxu0 0.0
        %776 = vmatprep.subr.mxu0 0.0
        %777 = vmatpush1.msra.mxu0 0.0
        %778 = vmatprep.subr.mxu0 0.0
        %779 = vmatpush1.msra.mxu0 0.0
        %780 = vmatprep.subr.mxu0 0.0
        %781 = vmatpush1.msra.mxu0 0.0
        %782 = vmatprep.subr.mxu0 0.0
        %783 = vmatpush1.msra.mxu0 0.0
        %784 = vmatprep.subr.mxu0 0.0
        %785 = vmatpush1.msra.mxu0 0.0
        %786 = vmatprep.subr.mxu0 0.0
        %787 = vmatpush1.msra.mxu0 0.0
        %788 = vmatprep.subr.mxu0 0.0
        %789 = vmatpush1.msra.mxu0 0.0
        %790 = vmatprep.subr.mxu0 0.0
        %791 = vmatpush1.msra.mxu0 0.0
        %792 = vmatprep.subr.mxu0 0.0
        %793 = vmatpush1.msra.mxu0 %v756
        %794 = vmatprep.subr.mxu0 0.0
        %795 = vmatpush1.msra.mxu0 %v755
        %796 = vmatprep.subr.mxu0 0.0
        %797 = vmatpush1.msra.mxu0 %v754
        %798 = vmatprep.subr.mxu0 0.0
        %799 = vmatpush1.msra.mxu0 %v753
        %800 = vmatprep.subr.mxu0 0.0
        %801 = vmatpush2.msra.mxu0 0.0
        %802 = vmatprep.subr.mxu0 0.0
        %803 = vmatpush2.msra.mxu0 0.0
        %804 = vmatprep.subr.mxu0 0.0
        %805 = vmatpush2.msra.mxu0 0.0
        %806 = vmatprep.subr.mxu0 0.0
        %807 = vmatpush2.msra.mxu0 0.0
        %808 = vmatprep.subr.mxu0 0.0
        %809 = vmatpush2.msra.mxu0 0.0
        %810 = vmatprep.subr.mxu0 0.0
        %811 = vmatpush2.msra.mxu0 0.0
        %812 = vmatprep.subr.mxu0 0.0
        %813 = vmatpush2.msra.mxu0 0.0
        %814 = vmatprep.subr.mxu0 0.0
        %815 = vmatpush2.msra.mxu0 0.0
        %816 = vmatprep.subr.mxu0 0.0
        %817 = vmatpush2.msra.mxu0 0.0
        %818 = vmatprep.subr.mxu0 0.0
        %819 = vmatpush2.msra.mxu0 0.0
        %820 = vmatprep.subr.mxu0 0.0
        %821 = vmatpush2.msra.mxu0 0.0
        %822 = vmatprep.subr.mxu0 0.0
        %823 = vmatpush2.msra.mxu0 0.0
        %824 = vmatprep.subr.mxu0 0.0
        %825 = vmatpush2.msra.mxu0 0.0
        %826 = vmatprep.subr.mxu0 0.0
        %827 = vmatpush2.msra.mxu0 0.0
        %828 = vmatprep.subr.mxu0 0.0
        %829 = vmatpush2.msra.mxu0 0.0
        %830 = vmatprep.subr.mxu0 0.0
        %831 = vmatpush2.msra.mxu0 0.0
        %832 = vmatprep.mubr.f32.mxu0 0.0
        %833 = vmatmul.mubr.f32.gmra.mxu0 %v766
        %v834 = vpop.f32.mrf.mxu0
        %v835 = vadd.f32 %v762, %v834
        %v836 = vpop.f32.mrf.mxu0
        %837 = vdwg.mxu0
        %vm838 = vcmask 785408
        %839 = vst.msk [vmem:[#allocation2] sm:$0xff] %vm838, %v835
        %v840 = vld [vmem:[#allocation2] sm:$0xff]
        %842 = vrot.lane.b32.xlu0 %v840, 96
        %v843 = vpop.permute.xlu0 %842
        %vm844 = vcmask 64512
        %v845 = vsel %vm844, %v840, 0
        %v847 = vsel %vm844, %v843, 0
        %849 = vmatprep.subr.mxu0 0.0
        %850 = vmatpush1.xpose.msra.mxu0 0.0
        %851 = vmatprep.subr.mxu0 0.0
        %852 = vmatpush1.xpose.msra.mxu0 0.0
        %853 = vmatprep.subr.mxu0 0.0
        %854 = vmatpush1.xpose.msra.mxu0 0.0
        %855 = vmatprep.subr.mxu0 0.0
        %856 = vmatpush1.xpose.msra.mxu0 0.0
        %857 = vmatprep.subr.mxu0 0.0
        %858 = vmatpush1.xpose.msra.mxu0 0.0
        %859 = vmatprep.subr.mxu0 0.0
        %860 = vmatpush1.xpose.msra.mxu0 0.0
        %861 = vmatprep.subr.mxu0 0.0
        %862 = vmatpush1.xpose.msra.mxu0 0.0
        %863 = vmatprep.subr.mxu0 0.0
        %864 = vmatpush1.xpose.msra.mxu0 0.0
        %865 = vmatprep.subr.mxu0 0.0
        %866 = vmatpush1.xpose.msra.mxu0 0.0
        %867 = vmatprep.subr.mxu0 0.0
        %868 = vmatpush1.xpose.msra.mxu0 0.0
        %869 = vmatprep.subr.mxu0 0.0
        %870 = vmatpush1.xpose.msra.mxu0 0.0
        %871 = vmatprep.subr.mxu0 0.0
        %872 = vmatpush1.xpose.msra.mxu0 0.0
        %873 = vmatprep.subr.mxu0 0.0
        %874 = vmatpush1.xpose.msra.mxu0 0.0
        %875 = vmatprep.subr.mxu0 0.0
        %876 = vmatpush1.xpose.msra.mxu0 0.0
        %877 = vmatprep.subr.mxu0 0.0
        %878 = vmatpush1.xpose.msra.mxu0 0.0
        %879 = vmatprep.subr.mxu0 0.0
        %880 = vmatpush1.xpose.msra.mxu0 %v847
        %881 = vmatprep.subr.mxu0 0.0
        %882 = vmatpush2.xpose.msra.mxu0 0.0
        %883 = vmatprep.subr.mxu0 0.0
        %884 = vmatpush2.xpose.msra.mxu0 0.0
        %885 = vmatprep.subr.mxu0 0.0
        %886 = vmatpush2.xpose.msra.mxu0 0.0
        %887 = vmatprep.subr.mxu0 0.0
        %888 = vmatpush2.xpose.msra.mxu0 0.0
        %889 = vmatprep.subr.mxu0 0.0
        %890 = vmatpush2.xpose.msra.mxu0 0.0
        %891 = vmatprep.subr.mxu0 0.0
        %892 = vmatpush2.xpose.msra.mxu0 0.0
        %893 = vmatprep.subr.mxu0 0.0
        %894 = vmatpush2.xpose.msra.mxu0 0.0
        %895 = vmatprep.subr.mxu0 0.0
        %896 = vmatpush2.xpose.msra.mxu0 0.0
        %897 = vmatprep.subr.mxu0 0.0
        %898 = vmatpush2.xpose.msra.mxu0 0.0
        %899 = vmatprep.subr.mxu0 0.0
        %900 = vmatpush2.xpose.msra.mxu0 0.0
        %901 = vmatprep.subr.mxu0 0.0
        %902 = vmatpush2.xpose.msra.mxu0 0.0
        %903 = vmatprep.subr.mxu0 0.0
        %904 = vmatpush2.xpose.msra.mxu0 0.0
        %905 = vmatprep.subr.mxu0 0.0
        %906 = vmatpush2.xpose.msra.mxu0 0.0
        %907 = vmatprep.subr.mxu0 0.0
        %908 = vmatpush2.xpose.msra.mxu0 0.0
        %909 = vmatprep.subr.mxu0 0.0
        %910 = vmatpush2.xpose.msra.mxu0 0.0
        %911 = vmatprep.subr.mxu0 0.0
        %912 = vmatpush2.xpose.msra.mxu0 0.0
        %913 = vmatprep.mubr.f32.mxu0 0.0
        %914 = vmatmul.mubr.f32.gmra.mxu0 %v845
        %v915 = vpop.f32.mrf.mxu0
        %v916 = vadd.f32 0.0, %v915
        %v917 = vpop.f32.mrf.mxu0
        %918 = vdwg.mxu0
        %vm919 = vcmp.gt.f32.partialorder %v752, 0.0
        %v920 = vsel %vm919, 1, 0
        %v921 = vlaneseq
        %v922 = vshrl.u32 %v921, 7
        %v923 = vsub.s32 0, %v922
        %v924 = vrot.slane %v920, %v923
        %vm925 = vcmp.eq.s32.totalorder %v924, 1
        %v926 = vsel %vm925, %v916, -1e+10
        %v927 = vsel %vm844, %v926, -inf
        %928 = vmax.xlane.f32.xlu0 %v927
        %v929 = vpop.xlane.xlu0 %928
        %v930 = vsub.f32 %v926, %v929
        %v931 = vmul.f32 %v930, 1.442695
        %v932 = vpow.pop %v931
        %v933 = vsel %vm844, %v932, 0.0
        %934 = vadd.xlane.f32.xlu0 %v933
        %v935 = vpop.xlane.xlu0 %934
        %v936 = vrcp.pop %v935
        %v937 = vmul.f32 %v932, %v936
        %938 = vrot.lane.b32.xlu0 %v840, 64
        %v939 = vpop.permute.xlu0 %938
        %v942 = vsel %vm844, %v937, 0
        %944 = vmatprep.subr.mxu0 0.0
        %945 = vmatpush1.msra.mxu0 0.0
        %946 = vmatprep.subr.mxu0 0.0
        %947 = vmatpush1.msra.mxu0 0.0
        %948 = vmatprep.subr.mxu0 0.0
        %949 = vmatpush1.msra.mxu0 0.0
        %950 = vmatprep.subr.mxu0 0.0
        %951 = vmatpush1.msra.mxu0 0.0
        %952 = vmatprep.subr.mxu0 0.0
        %953 = vmatpush1.msra.mxu0 0.0
        %954 = vmatprep.subr.mxu0 0.0
        %955 = vmatpush1.msra.mxu0 0.0
        %956 = vmatprep.subr.mxu0 0.0
        %957 = vmatpush1.msra.mxu0 0.0
        %958 = vmatprep.subr.mxu0 0.0
        %959 = vmatpush1.msra.mxu0 0.0
        %960 = vmatprep.subr.mxu0 0.0
        %961 = vmatpush1.msra.mxu0 0.0
        %962 = vmatprep.subr.mxu0 0.0
        %963 = vmatpush1.msra.mxu0 0.0
        %964 = vmatprep.subr.mxu0 0.0
        %965 = vmatpush1.msra.mxu0 0.0
        %966 = vmatprep.subr.mxu0 0.0
        %967 = vmatpush1.msra.mxu0 0.0
        %968 = vmatprep.subr.mxu0 0.0
        %969 = vmatpush1.msra.mxu0 0.0
        %970 = vmatprep.subr.mxu0 0.0
        %971 = vmatpush1.msra.mxu0 0.0
        %972 = vmatprep.subr.mxu0 0.0
        %973 = vmatpush1.msra.mxu0 0.0
        %974 = vmatprep.subr.mxu0 0.0
        %975 = vmatpush1.msra.mxu0 %v939
        %976 = vmatprep.subr.mxu0 0.0
        %977 = vmatpush2.msra.mxu0 0.0
        %978 = vmatprep.subr.mxu0 0.0
        %979 = vmatpush2.msra.mxu0 0.0
        %980 = vmatprep.subr.mxu0 0.0
        %981 = vmatpush2.msra.mxu0 0.0
        %982 = vmatprep.subr.mxu0 0.0
        %983 = vmatpush2.msra.mxu0 0.0
        %984 = vmatprep.subr.mxu0 0.0
        %985 = vmatpush2.msra.mxu0 0.0
        %986 = vmatprep.subr.mxu0 0.0
        %987 = vmatpush2.msra.mxu0 0.0
        %988 = vmatprep.subr.mxu0 0.0
        %989 = vmatpush2.msra.mxu0 0.0
        %990 = vmatprep.subr.mxu0 0.0
        %991 = vmatpush2.msra.mxu0 0.0
        %992 = vmatprep.subr.mxu0 0.0
        %993 = vmatpush2.msra.mxu0 0.0
        %994 = vmatprep.subr.mxu0 0.0
        %995 = vmatpush2.msra.mxu0 0.0
        %996 = vmatprep.subr.mxu0 0.0
        %997 = vmatpush2.msra.mxu0 0.0
        %998 = vmatprep.subr.mxu0 0.0
        %999 = vmatpush2.msra.mxu0 0.0
        %1000 = vmatprep.subr.mxu0 0.0
        %1001 = vmatpush2.msra.mxu0 0.0
        %1002 = vmatprep.subr.mxu0 0.0
        %1003 = vmatpush2.msra.mxu0 0.0
        %1004 = vmatprep.subr.mxu0 0.0
        %1005 = vmatpush2.msra.mxu0 0.0
        %1006 = vmatprep.subr.mxu0 0.0
        %1007 = vmatpush2.msra.mxu0 0.0
        %1008 = vmatprep.mubr.f32.mxu0 0.0
        %1009 = vmatmul.mubr.f32.gmra.mxu0 %v942
        %v1010 = vpop.f32.mrf.mxu0
        %v1011 = vadd.f32 0.0, %v1010
        %v1012 = vpop.f32.mrf.mxu0
        %1013 = vdwg.mxu0
        %1014 = vst.msk [vmem:[#allocation3] sm:$0xff] %vm844, %v1011
        %v1015 = vld [vmem:[#allocation2] sm:$0xff]
        %1017 = vrot.lane.b32.xlu0 %v1015, 120
        %v1018 = vpop.permute.xlu0 %1017
        %1019 = vrot.lane.b32.xlu0 %v1015, 88
        %v1020 = vpop.permute.xlu0 %1019
        %v1021 = vsel %vm844, %v1018, 0
        %v1023 = vsel %vm844, %v1020, 0
        %1025 = vmatprep.subr.mxu0 0.0
        %1026 = vmatpush1.xpose.msra.mxu0 0.0
        %1027 = vmatprep.subr.mxu0 0.0
        %1028 = vmatpush1.xpose.msra.mxu0 0.0
        %1029 = vmatprep.subr.mxu0 0.0
        %1030 = vmatpush1.xpose.msra.mxu0 0.0
        %1031 = vmatprep.subr.mxu0 0.0
        %1032 = vmatpush1.xpose.msra.mxu0 0.0
        %1033 = vmatprep.subr.mxu0 0.0
        %1034 = vmatpush1.xpose.msra.mxu0 0.0
        %1035 = vmatprep.subr.mxu0 0.0
        %1036 = vmatpush1.xpose.msra.mxu0 0.0
        %1037 = vmatprep.subr.mxu0 0.0
        %1038 = vmatpush1.xpose.msra.mxu0 0.0
        %1039 = vmatprep.subr.mxu0 0.0
        %1040 = vmatpush1.xpose.msra.mxu0 0.0
        %1041 = vmatprep.subr.mxu0 0.0
        %1042 = vmatpush1.xpose.msra.mxu0 0.0
        %1043 = vmatprep.subr.mxu0 0.0
        %1044 = vmatpush1.xpose.msra.mxu0 0.0
        %1045 = vmatprep.subr.mxu0 0.0
        %1046 = vmatpush1.xpose.msra.mxu0 0.0
        %1047 = vmatprep.subr.mxu0 0.0
        %1048 = vmatpush1.xpose.msra.mxu0 0.0
        %1049 = vmatprep.subr.mxu0 0.0
        %1050 = vmatpush1.xpose.msra.mxu0 0.0
        %1051 = vmatprep.subr.mxu0 0.0
        %1052 = vmatpush1.xpose.msra.mxu0 0.0
        %1053 = vmatprep.subr.mxu0 0.0
        %1054 = vmatpush1.xpose.msra.mxu0 0.0
        %1055 = vmatprep.subr.mxu0 0.0
        %1056 = vmatpush1.xpose.msra.mxu0 %v1023
        %1057 = vmatprep.subr.mxu0 0.0
        %1058 = vmatpush2.xpose.msra.mxu0 0.0
        %1059 = vmatprep.subr.mxu0 0.0
        %1060 = vmatpush2.xpose.msra.mxu0 0.0
        %1061 = vmatprep.subr.mxu0 0.0
        %1062 = vmatpush2.xpose.msra.mxu0 0.0
        %1063 = vmatprep.subr.mxu0 0.0
        %1064 = vmatpush2.xpose.msra.mxu0 0.0
        %1065 = vmatprep.subr.mxu0 0.0
        %1066 = vmatpush2.xpose.msra.mxu0 0.0
        %1067 = vmatprep.subr.mxu0 0.0
        %1068 = vmatpush2.xpose.msra.mxu0 0.0
        %1069 = vmatprep.subr.mxu0 0.0
        %1070 = vmatpush2.xpose.msra.mxu0 0.0
        %1071 = vmatprep.subr.mxu0 0.0
        %1072 = vmatpush2.xpose.msra.mxu0 0.0
        %1073 = vmatprep.subr.mxu0 0.0
        %1074 = vmatpush2.xpose.msra.mxu0 0.0
        %1075 = vmatprep.subr.mxu0 0.0
        %1076 = vmatpush2.xpose.msra.mxu0 0.0
        %1077 = vmatprep.subr.mxu0 0.0
        %1078 = vmatpush2.xpose.msra.mxu0 0.0
        %1079 = vmatprep.subr.mxu0 0.0
        %1080 = vmatpush2.xpose.msra.mxu0 0.0
        %1081 = vmatprep.subr.mxu0 0.0
        %1082 = vmatpush2.xpose.msra.mxu0 0.0
        %1083 = vmatprep.subr.mxu0 0.0
        %1084 = vmatpush2.xpose.msra.mxu0 0.0
        %1085 = vmatprep.subr.mxu0 0.0
        %1086 = vmatpush2.xpose.msra.mxu0 0.0
        %1087 = vmatprep.subr.mxu0 0.0
        %1088 = vmatpush2.xpose.msra.mxu0 0.0
        %1089 = vmatprep.mubr.f32.mxu0 0.0
        %1090 = vmatmul.mubr.f32.gmra.mxu0 %v1021
        %v1091 = vpop.f32.mrf.mxu0
        %v1092 = vadd.f32 0.0, %v1091
        %v1093 = vpop.f32.mrf.mxu0
        %1094 = vdwg.mxu0
        %v1095 = vsel %vm925, %v1092, -1e+10
        %v1096 = vsel %vm844, %v1095, -inf
        %1097 = vmax.xlane.f32.xlu0 %v1096
        %v1098 = vpop.xlane.xlu0 %1097
        %v1099 = vsub.f32 %v1095, %v1098
        %v1100 = vmul.f32 %v1099, 1.442695
        %v1101 = vpow.pop %v1100
        %v1102 = vsel %vm844, %v1101, 0.0
        %1103 = vadd.xlane.f32.xlu0 %v1102
        %v1104 = vpop.xlane.xlu0 %1103
        %v1105 = vrcp.pop %v1104
        %v1106 = vmul.f32 %v1101, %v1105
        %1107 = vrot.lane.b32.xlu0 %v1015, 56
        %v1108 = vpop.permute.xlu0 %1107
        %v1111 = vsel %vm844, %v1106, 0
        %1113 = vmatprep.subr.mxu0 0.0
        %1114 = vmatpush1.msra.mxu0 0.0
        %1115 = vmatprep.subr.mxu0 0.0
        %1116 = vmatpush1.msra.mxu0 0.0
        %1117 = vmatprep.subr.mxu0 0.0
        %1118 = vmatpush1.msra.mxu0 0.0
        %1119 = vmatprep.subr.mxu0 0.0
        %1120 = vmatpush1.msra.mxu0 0.0
        %1121 = vmatprep.subr.mxu0 0.0
        %1122 = vmatpush1.msra.mxu0 0.0
        %1123 = vmatprep.subr.mxu0 0.0
        %1124 = vmatpush1.msra.mxu0 0.0
        %1125 = vmatprep.subr.mxu0 0.0
        %1126 = vmatpush1.msra.mxu0 0.0
        %1127 = vmatprep.subr.mxu0 0.0
        %1128 = vmatpush1.msra.mxu0 0.0
        %1129 = vmatprep.subr.mxu0 0.0
        %1130 = vmatpush1.msra.mxu0 0.0
        %1131 = vmatprep.subr.mxu0 0.0
        %1132 = vmatpush1.msra.mxu0 0.0
        %1133 = vmatprep.subr.mxu0 0.0
        %1134 = vmatpush1.msra.mxu0 0.0
        %1135 = vmatprep.subr.mxu0 0.0
        %1136 = vmatpush1.msra.mxu0 0.0
        %1137 = vmatprep.subr.mxu0 0.0
        %1138 = vmatpush1.msra.mxu0 0.0
        %1139 = vmatprep.subr.mxu0 0.0
        %1140 = vmatpush1.msra.mxu0 0.0
        %1141 = vmatprep.subr.mxu0 0.0
        %1142 = vmatpush1.msra.mxu0 0.0
        %1143 = vmatprep.subr.mxu0 0.0
        %1144 = vmatpush1.msra.mxu0 %v1108
        %1145 = vmatprep.subr.mxu0 0.0
        %1146 = vmatpush2.msra.mxu0 0.0
        %1147 = vmatprep.subr.mxu0 0.0
        %1148 = vmatpush2.msra.mxu0 0.0
        %1149 = vmatprep.subr.mxu0 0.0
        %1150 = vmatpush2.msra.mxu0 0.0
        %1151 = vmatprep.subr.mxu0 0.0
        %1152 = vmatpush2.msra.mxu0 0.0
        %1153 = vmatprep.subr.mxu0 0.0
        %1154 = vmatpush2.msra.mxu0 0.0
        %1155 = vmatprep.subr.mxu0 0.0
        %1156 = vmatpush2.msra.mxu0 0.0
        %1157 = vmatprep.subr.mxu0 0.0
        %1158 = vmatpush2.msra.mxu0 0.0
        %1159 = vmatprep.subr.mxu0 0.0
        %1160 = vmatpush2.msra.mxu0 0.0
        %1161 = vmatprep.subr.mxu0 0.0
        %1162 = vmatpush2.msra.mxu0 0.0
        %1163 = vmatprep.subr.mxu0 0.0
        %1164 = vmatpush2.msra.mxu0 0.0
        %1165 = vmatprep.subr.mxu0 0.0
        %1166 = vmatpush2.msra.mxu0 0.0
        %1167 = vmatprep.subr.mxu0 0.0
        %1168 = vmatpush2.msra.mxu0 0.0
        %1169 = vmatprep.subr.mxu0 0.0
        %1170 = vmatpush2.msra.mxu0 0.0
        %1171 = vmatprep.subr.mxu0 0.0
        %1172 = vmatpush2.msra.mxu0 0.0
        %1173 = vmatprep.subr.mxu0 0.0
        %1174 = vmatpush2.msra.mxu0 0.0
        %1175 = vmatprep.subr.mxu0 0.0
        %1176 = vmatpush2.msra.mxu0 0.0
        %1177 = vmatprep.mubr.f32.mxu0 0.0
        %1178 = vmatmul.mubr.f32.gmra.mxu0 %v1111
        %v1179 = vpop.f32.mrf.mxu0
        %v1180 = vadd.f32 0.0, %v1179
        %v1181 = vpop.f32.mrf.mxu0
        %1182 = vdwg.mxu0
        %1184 = vrot.lane.b32.xlu0 %v1180, 8
        %v1185 = vpop.permute.xlu0 %1184
        %vm1187 = vcmask 130112
        %1188 = vst.msk [vmem:[#allocation3] sm:$0xff] %vm1187, %v1185
        %v1189 = vld [vmem:[#allocation2] sm:$0xff]
        %1191 = vrot.lane.b32.xlu0 %v1189, 112
        %v1192 = vpop.permute.xlu0 %1191
        %1193 = vrot.lane.b32.xlu0 %v1189, 80
        %v1194 = vpop.permute.xlu0 %1193
        %v1195 = vsel %vm844, %v1192, 0
        %v1197 = vsel %vm844, %v1194, 0
        %1199 = vmatprep.subr.mxu0 0.0
        %1200 = vmatpush1.xpose.msra.mxu0 0.0
        %1201 = vmatprep.subr.mxu0 0.0
        %1202 = vmatpush1.xpose.msra.mxu0 0.0
        %1203 = vmatprep.subr.mxu0 0.0
        %1204 = vmatpush1.xpose.msra.mxu0 0.0
        %1205 = vmatprep.subr.mxu0 0.0
        %1206 = vmatpush1.xpose.msra.mxu0 0.0
        %1207 = vmatprep.subr.mxu0 0.0
        %1208 = vmatpush1.xpose.msra.mxu0 0.0
        %1209 = vmatprep.subr.mxu0 0.0
        %1210 = vmatpush1.xpose.msra.mxu0 0.0
        %1211 = vmatprep.subr.mxu0 0.0
        %1212 = vmatpush1.xpose.msra.mxu0 0.0
        %1213 = vmatprep.subr.mxu0 0.0
        %1214 = vmatpush1.xpose.msra.mxu0 0.0
        %1215 = vmatprep.subr.mxu0 0.0
        %1216 = vmatpush1.xpose.msra.mxu0 0.0
        %1217 = vmatprep.subr.mxu0 0.0
        %1218 = vmatpush1.xpose.msra.mxu0 0.0
        %1219 = vmatprep.subr.mxu0 0.0
        %1220 = vmatpush1.xpose.msra.mxu0 0.0
        %1221 = vmatprep.subr.mxu0 0.0
        %1222 = vmatpush1.xpose.msra.mxu0 0.0
        %1223 = vmatprep.subr.mxu0 0.0
        %1224 = vmatpush1.xpose.msra.mxu0 0.0
        %1225 = vmatprep.subr.mxu0 0.0
        %1226 = vmatpush1.xpose.msra.mxu0 0.0
        %1227 = vmatprep.subr.mxu0 0.0
        %1228 = vmatpush1.xpose.msra.mxu0 0.0
        %1229 = vmatprep.subr.mxu0 0.0
        %1230 = vmatpush1.xpose.msra.mxu0 %v1197
        %1231 = vmatprep.subr.mxu0 0.0
        %1232 = vmatpush2.xpose.msra.mxu0 0.0
        %1233 = vmatprep.subr.mxu0 0.0
        %1234 = vmatpush2.xpose.msra.mxu0 0.0
        %1235 = vmatprep.subr.mxu0 0.0
        %1236 = vmatpush2.xpose.msra.mxu0 0.0
        %1237 = vmatprep.subr.mxu0 0.0
        %1238 = vmatpush2.xpose.msra.mxu0 0.0
        %1239 = vmatprep.subr.mxu0 0.0
        %1240 = vmatpush2.xpose.msra.mxu0 0.0
        %1241 = vmatprep.subr.mxu0 0.0
        %1242 = vmatpush2.xpose.msra.mxu0 0.0
        %1243 = vmatprep.subr.mxu0 0.0
        %1244 = vmatpush2.xpose.msra.mxu0 0.0
        %1245 = vmatprep.subr.mxu0 0.0
        %1246 = vmatpush2.xpose.msra.mxu0 0.0
        %1247 = vmatprep.subr.mxu0 0.0
        %1248 = vmatpush2.xpose.msra.mxu0 0.0
        %1249 = vmatprep.subr.mxu0 0.0
        %1250 = vmatpush2.xpose.msra.mxu0 0.0
        %1251 = vmatprep.subr.mxu0 0.0
        %1252 = vmatpush2.xpose.msra.mxu0 0.0
        %1253 = vmatprep.subr.mxu0 0.0
        %1254 = vmatpush2.xpose.msra.mxu0 0.0
        %1255 = vmatprep.subr.mxu0 0.0
        %1256 = vmatpush2.xpose.msra.mxu0 0.0
        %1257 = vmatprep.subr.mxu0 0.0
        %1258 = vmatpush2.xpose.msra.mxu0 0.0
        %1259 = vmatprep.subr.mxu0 0.0
        %1260 = vmatpush2.xpose.msra.mxu0 0.0
        %1261 = vmatprep.subr.mxu0 0.0
        %1262 = vmatpush2.xpose.msra.mxu0 0.0
        %1263 = vmatprep.mubr.f32.mxu0 0.0
        %1264 = vmatmul.mubr.f32.gmra.mxu0 %v1195
        %v1265 = vpop.f32.mrf.mxu0
        %v1266 = vadd.f32 0.0, %v1265
        %v1267 = vpop.f32.mrf.mxu0
        %1268 = vdwg.mxu0
        %v1269 = vsel %vm925, %v1266, -1e+10
        %v1270 = vsel %vm844, %v1269, -inf
        %1271 = vmax.xlane.f32.xlu0 %v1270
        %v1272 = vpop.xlane.xlu0 %1271
        %v1273 = vsub.f32 %v1269, %v1272
        %v1274 = vmul.f32 %v1273, 1.442695
        %v1275 = vpow.pop %v1274
        %v1276 = vsel %vm844, %v1275, 0.0
        %1277 = vadd.xlane.f32.xlu0 %v1276
        %v1278 = vpop.xlane.xlu0 %1277
        %v1279 = vrcp.pop %v1278
        %v1280 = vmul.f32 %v1275, %v1279
        %1281 = vrot.lane.b32.xlu0 %v1189, 48
        %v1282 = vpop.permute.xlu0 %1281
        %v1285 = vsel %vm844, %v1280, 0
        %1287 = vmatprep.subr.mxu0 0.0
        %1288 = vmatpush1.msra.mxu0 0.0
        %1289 = vmatprep.subr.mxu0 0.0
        %1290 = vmatpush1.msra.mxu0 0.0
        %1291 = vmatprep.subr.mxu0 0.0
        %1292 = vmatpush1.msra.mxu0 0.0
        %1293 = vmatprep.subr.mxu0 0.0
        %1294 = vmatpush1.msra.mxu0 0.0
        %1295 = vmatprep.subr.mxu0 0.0
        %1296 = vmatpush1.msra.mxu0 0.0
        %1297 = vmatprep.subr.mxu0 0.0
        %1298 = vmatpush1.msra.mxu0 0.0
        %1299 = vmatprep.subr.mxu0 0.0
        %1300 = vmatpush1.msra.mxu0 0.0
        %1301 = vmatprep.subr.mxu0 0.0
        %1302 = vmatpush1.msra.mxu0 0.0
        %1303 = vmatprep.subr.mxu0 0.0
        %1304 = vmatpush1.msra.mxu0 0.0
        %1305 = vmatprep.subr.mxu0 0.0
        %1306 = vmatpush1.msra.mxu0 0.0
        %1307 = vmatprep.subr.mxu0 0.0
        %1308 = vmatpush1.msra.mxu0 0.0
        %1309 = vmatprep.subr.mxu0 0.0
        %1310 = vmatpush1.msra.mxu0 0.0
        %1311 = vmatprep.subr.mxu0 0.0
        %1312 = vmatpush1.msra.mxu0 0.0
        %1313 = vmatprep.subr.mxu0 0.0
        %1314 = vmatpush1.msra.mxu0 0.0
        %1315 = vmatprep.subr.mxu0 0.0
        %1316 = vmatpush1.msra.mxu0 0.0
        %1317 = vmatprep.subr.mxu0 0.0
        %1318 = vmatpush1.msra.mxu0 %v1282
        %1319 = vmatprep.subr.mxu0 0.0
        %1320 = vmatpush2.msra.mxu0 0.0
        %1321 = vmatprep.subr.mxu0 0.0
        %1322 = vmatpush2.msra.mxu0 0.0
        %1323 = vmatprep.subr.mxu0 0.0
        %1324 = vmatpush2.msra.mxu0 0.0
        %1325 = vmatprep.subr.mxu0 0.0
        %1326 = vmatpush2.msra.mxu0 0.0
        %1327 = vmatprep.subr.mxu0 0.0
        %1328 = vmatpush2.msra.mxu0 0.0
        %1329 = vmatprep.subr.mxu0 0.0
        %1330 = vmatpush2.msra.mxu0 0.0
        %1331 = vmatprep.subr.mxu0 0.0
        %1332 = vmatpush2.msra.mxu0 0.0
        %1333 = vmatprep.subr.mxu0 0.0
        %1334 = vmatpush2.msra.mxu0 0.0
        %1335 = vmatprep.subr.mxu0 0.0
        %1336 = vmatpush2.msra.mxu0 0.0
        %1337 = vmatprep.subr.mxu0 0.0
        %1338 = vmatpush2.msra.mxu0 0.0
        %1339 = vmatprep.subr.mxu0 0.0
        %1340 = vmatpush2.msra.mxu0 0.0
        %1341 = vmatprep.subr.mxu0 0.0
        %1342 = vmatpush2.msra.mxu0 0.0
        %1343 = vmatprep.subr.mxu0 0.0
        %1344 = vmatpush2.msra.mxu0 0.0
        %1345 = vmatprep.subr.mxu0 0.0
        %1346 = vmatpush2.msra.mxu0 0.0
        %1347 = vmatprep.subr.mxu0 0.0
        %1348 = vmatpush2.msra.mxu0 0.0
        %1349 = vmatprep.subr.mxu0 0.0
        %1350 = vmatpush2.msra.mxu0 0.0
        %1351 = vmatprep.mubr.f32.mxu0 0.0
        %1352 = vmatmul.mubr.f32.gmra.mxu0 %v1285
        %v1353 = vpop.f32.mrf.mxu0
        %v1354 = vadd.f32 0.0, %v1353
        %v1355 = vpop.f32.mrf.mxu0
        %1356 = vdwg.mxu0
        %1358 = vrot.lane.b32.xlu0 %v1354, 16
        %v1359 = vpop.permute.xlu0 %1358
        %vm1361 = vcmask 195712
        %1362 = vst.msk [vmem:[#allocation3] sm:$0xff] %vm1361, %v1359
        %v1363 = vld [vmem:[#allocation2] sm:$0xff]
        %1365 = vrot.lane.b32.xlu0 %v1363, 104
        %v1366 = vpop.permute.xlu0 %1365
        %1367 = vrot.lane.b32.xlu0 %v1363, 72
        %v1368 = vpop.permute.xlu0 %1367
        %v1369 = vsel %vm844, %v1366, 0
        %v1371 = vsel %vm844, %v1368, 0
        %1373 = vmatprep.subr.mxu0 0.0
        %1374 = vmatpush1.xpose.msra.mxu0 0.0
        %1375 = vmatprep.subr.mxu0 0.0
        %1376 = vmatpush1.xpose.msra.mxu0 0.0
        %1377 = vmatprep.subr.mxu0 0.0
        %1378 = vmatpush1.xpose.msra.mxu0 0.0
        %1379 = vmatprep.subr.mxu0 0.0
        %1380 = vmatpush1.xpose.msra.mxu0 0.0
        %1381 = vmatprep.subr.mxu0 0.0
        %1382 = vmatpush1.xpose.msra.mxu0 0.0
        %1383 = vmatprep.subr.mxu0 0.0
        %1384 = vmatpush1.xpose.msra.mxu0 0.0
        %1385 = vmatprep.subr.mxu0 0.0
        %1386 = vmatpush1.xpose.msra.mxu0 0.0
        %1387 = vmatprep.subr.mxu0 0.0
        %1388 = vmatpush1.xpose.msra.mxu0 0.0
        %1389 = vmatprep.subr.mxu0 0.0
        %1390 = vmatpush1.xpose.msra.mxu0 0.0
        %1391 = vmatprep.subr.mxu0 0.0
        %1392 = vmatpush1.xpose.msra.mxu0 0.0
        %1393 = vmatprep.subr.mxu0 0.0
        %1394 = vmatpush1.xpose.msra.mxu0 0.0
        %1395 = vmatprep.subr.mxu0 0.0
        %1396 = vmatpush1.xpose.msra.mxu0 0.0
        %1397 = vmatprep.subr.mxu0 0.0
        %1398 = vmatpush1.xpose.msra.mxu0 0.0
        %1399 = vmatprep.subr.mxu0 0.0
        %1400 = vmatpush1.xpose.msra.mxu0 0.0
        %1401 = vmatprep.subr.mxu0 0.0
        %1402 = vmatpush1.xpose.msra.mxu0 0.0
        %1403 = vmatprep.subr.mxu0 0.0
        %1404 = vmatpush1.xpose.msra.mxu0 %v1371
        %1405 = vmatprep.subr.mxu0 0.0
        %1406 = vmatpush2.xpose.msra.mxu0 0.0
        %1407 = vmatprep.subr.mxu0 0.0
        %1408 = vmatpush2.xpose.msra.mxu0 0.0
        %1409 = vmatprep.subr.mxu0 0.0
        %1410 = vmatpush2.xpose.msra.mxu0 0.0
        %1411 = vmatprep.subr.mxu0 0.0
        %1412 = vmatpush2.xpose.msra.mxu0 0.0
        %1413 = vmatprep.subr.mxu0 0.0
        %1414 = vmatpush2.xpose.msra.mxu0 0.0
        %1415 = vmatprep.subr.mxu0 0.0
        %1416 = vmatpush2.xpose.msra.mxu0 0.0
        %1417 = vmatprep.subr.mxu0 0.0
        %1418 = vmatpush2.xpose.msra.mxu0 0.0
        %1419 = vmatprep.subr.mxu0 0.0
        %1420 = vmatpush2.xpose.msra.mxu0 0.0
        %1421 = vmatprep.subr.mxu0 0.0
        %1422 = vmatpush2.xpose.msra.mxu0 0.0
        %1423 = vmatprep.subr.mxu0 0.0
        %1424 = vmatpush2.xpose.msra.mxu0 0.0
        %1425 = vmatprep.subr.mxu0 0.0
        %1426 = vmatpush2.xpose.msra.mxu0 0.0
        %1427 = vmatprep.subr.mxu0 0.0
        %1428 = vmatpush2.xpose.msra.mxu0 0.0
        %1429 = vmatprep.subr.mxu0 0.0
        %1430 = vmatpush2.xpose.msra.mxu0 0.0
        %1431 = vmatprep.subr.mxu0 0.0
        %1432 = vmatpush2.xpose.msra.mxu0 0.0
        %1433 = vmatprep.subr.mxu0 0.0
        %1434 = vmatpush2.xpose.msra.mxu0 0.0
        %1435 = vmatprep.subr.mxu0 0.0
        %1436 = vmatpush2.xpose.msra.mxu0 0.0
        %1437 = vmatprep.mubr.f32.mxu0 0.0
        %1438 = vmatmul.mubr.f32.gmra.mxu0 %v1369
        %v1439 = vpop.f32.mrf.mxu0
        %v1440 = vadd.f32 0.0, %v1439
        %v1441 = vpop.f32.mrf.mxu0
        %1442 = vdwg.mxu0
        %v1443 = vsel %vm925, %v1440, -1e+10
        %v1444 = vsel %vm844, %v1443, -inf
        %1445 = vmax.xlane.f32.xlu0 %v1444
        %v1446 = vpop.xlane.xlu0 %1445
        %v1447 = vsub.f32 %v1443, %v1446
        %v1448 = vmul.f32 %v1447, 1.442695
        %v1449 = vpow.pop %v1448
        %v1450 = vsel %vm844, %v1449, 0.0
        %1451 = vadd.xlane.f32.xlu0 %v1450
        %v1452 = vpop.xlane.xlu0 %1451
        %v1453 = vrcp.pop %v1452
        %v1454 = vmul.f32 %v1449, %v1453
        %1455 = vrot.lane.b32.xlu0 %v1363, 40
        %v1456 = vpop.permute.xlu0 %1455
        %v1459 = vsel %vm844, %v1454, 0
        %1461 = vmatprep.subr.mxu0 0.0
        %1462 = vmatpush1.msra.mxu0 0.0
        %1463 = vmatprep.subr.mxu0 0.0
        %1464 = vmatpush1.msra.mxu0 0.0
        %1465 = vmatprep.subr.mxu0 0.0
        %1466 = vmatpush1.msra.mxu0 0.0
        %1467 = vmatprep.subr.mxu0 0.0
        %1468 = vmatpush1.msra.mxu0 0.0
        %1469 = vmatprep.subr.mxu0 0.0
        %1470 = vmatpush1.msra.mxu0 0.0
        %1471 = vmatprep.subr.mxu0 0.0
        %1472 = vmatpush1.msra.mxu0 0.0
        %1473 = vmatprep.subr.mxu0 0.0
        %1474 = vmatpush1.msra.mxu0 0.0
        %1475 = vmatprep.subr.mxu0 0.0
        %1476 = vmatpush1.msra.mxu0 0.0
        %1477 = vmatprep.subr.mxu0 0.0
        %1478 = vmatpush1.msra.mxu0 0.0
        %1479 = vmatprep.subr.mxu0 0.0
        %1480 = vmatpush1.msra.mxu0 0.0
        %1481 = vmatprep.subr.mxu0 0.0
        %1482 = vmatpush1.msra.mxu0 0.0
        %1483 = vmatprep.subr.mxu0 0.0
        %1484 = vmatpush1.msra.mxu0 0.0
        %1485 = vmatprep.subr.mxu0 0.0
        %1486 = vmatpush1.msra.mxu0 0.0
        %1487 = vmatprep.subr.mxu0 0.0
        %1488 = vmatpush1.msra.mxu0 0.0
        %1489 = vmatprep.subr.mxu0 0.0
        %1490 = vmatpush1.msra.mxu0 0.0
        %1491 = vmatprep.subr.mxu0 0.0
        %1492 = vmatpush1.msra.mxu0 %v1456
        %1493 = vmatprep.subr.mxu0 0.0
        %1494 = vmatpush2.msra.mxu0 0.0
        %1495 = vmatprep.subr.mxu0 0.0
        %1496 = vmatpush2.msra.mxu0 0.0
        %1497 = vmatprep.subr.mxu0 0.0
        %1498 = vmatpush2.msra.mxu0 0.0
        %1499 = vmatprep.subr.mxu0 0.0
        %1500 = vmatpush2.msra.mxu0 0.0
        %1501 = vmatprep.subr.mxu0 0.0
        %1502 = vmatpush2.msra.mxu0 0.0
        %1503 = vmatprep.subr.mxu0 0.0
        %1504 = vmatpush2.msra.mxu0 0.0
        %1505 = vmatprep.subr.mxu0 0.0
        %1506 = vmatpush2.msra.mxu0 0.0
        %1507 = vmatprep.subr.mxu0 0.0
        %1508 = vmatpush2.msra.mxu0 0.0
        %1509 = vmatprep.subr.mxu0 0.0
        %1510 = vmatpush2.msra.mxu0 0.0
        %1511 = vmatprep.subr.mxu0 0.0
        %1512 = vmatpush2.msra.mxu0 0.0
        %1513 = vmatprep.subr.mxu0 0.0
        %1514 = vmatpush2.msra.mxu0 0.0
        %1515 = vmatprep.subr.mxu0 0.0
        %1516 = vmatpush2.msra.mxu0 0.0
        %1517 = vmatprep.subr.mxu0 0.0
        %1518 = vmatpush2.msra.mxu0 0.0
        %1519 = vmatprep.subr.mxu0 0.0
        %1520 = vmatpush2.msra.mxu0 0.0
        %1521 = vmatprep.subr.mxu0 0.0
        %1522 = vmatpush2.msra.mxu0 0.0
        %1523 = vmatprep.subr.mxu0 0.0
        %1524 = vmatpush2.msra.mxu0 0.0
        %1525 = vmatprep.mubr.f32.mxu0 0.0
        %1526 = vmatmul.mubr.f32.gmra.mxu0 %v1459
        %v1527 = vpop.f32.mrf.mxu0
        %v1528 = vadd.f32 0.0, %v1527
        %v1529 = vpop.f32.mrf.mxu0
        %1530 = vdwg.mxu0
        %1532 = vrot.lane.b32.xlu0 %v1528, 24
        %v1533 = vpop.permute.xlu0 %1532
        %vm1535 = vcmask 261312
        %1536 = vst.msk [vmem:[#allocation3] sm:$0xff] %vm1535, %v1533
        %v1537 = vld [vmem:[#allocation3] sm:$0xff]
        %v1538 = vld [vmem:[%s709] sm:$0xff]
        %v1539 = vld [vmem:[%s709 + $0x8] sm:$0xff]
        %v1540 = vld [vmem:[%s709 + $0x10] sm:$0xff]
        %v1541 = vld [vmem:[%s709 + $0x18] sm:$0xff]
        %v1542 = vld [vmem:[%s712] sm:$0x1]
        %v1544 = vlaneseq
        %v1545 = vshrl.u32 %v1544, 7
        %v1546 = vsub.s32 0, %v1545
        %v1547 = vrot.slane %v1542, %v1546
        %v1550 = vsel %vm764, %v1537, 0
        %1552 = vmatprep.subr.mxu0 0.0
        %1553 = vmatpush1.msra.mxu0 0.0
        %1554 = vmatprep.subr.mxu0 0.0
        %1555 = vmatpush1.msra.mxu0 0.0
        %1556 = vmatprep.subr.mxu0 0.0
        %1557 = vmatpush1.msra.mxu0 0.0
        %1558 = vmatprep.subr.mxu0 0.0
        %1559 = vmatpush1.msra.mxu0 0.0
        %1560 = vmatprep.subr.mxu0 0.0
        %1561 = vmatpush1.msra.mxu0 0.0
        %1562 = vmatprep.subr.mxu0 0.0
        %1563 = vmatpush1.msra.mxu0 0.0
        %1564 = vmatprep.subr.mxu0 0.0
        %1565 = vmatpush1.msra.mxu0 0.0
        %1566 = vmatprep.subr.mxu0 0.0
        %1567 = vmatpush1.msra.mxu0 0.0
        %1568 = vmatprep.subr.mxu0 0.0
        %1569 = vmatpush1.msra.mxu0 0.0
        %1570 = vmatprep.subr.mxu0 0.0
        %1571 = vmatpush1.msra.mxu0 0.0
        %1572 = vmatprep.subr.mxu0 0.0
        %1573 = vmatpush1.msra.mxu0 0.0
        %1574 = vmatprep.subr.mxu0 0.0
        %1575 = vmatpush1.msra.mxu0 0.0
        %1576 = vmatprep.subr.mxu0 0.0
        %1577 = vmatpush1.msra.mxu0 %v1541
        %1578 = vmatprep.subr.mxu0 0.0
        %1579 = vmatpush1.msra.mxu0 %v1540
        %1580 = vmatprep.subr.mxu0 0.0
        %1581 = vmatpush1.msra.mxu0 %v1539
        %1582 = vmatprep.subr.mxu0 0.0
        %1583 = vmatpush1.msra.mxu0 %v1538
        %1584 = vmatprep.subr.mxu0 0.0
        %1585 = vmatpush2.msra.mxu0 0.0
        %1586 = vmatprep.subr.mxu0 0.0
        %1587 = vmatpush2.msra.mxu0 0.0
        %1588 = vmatprep.subr.mxu0 0.0
        %1589 = vmatpush2.msra.mxu0 0.0
        %1590 = vmatprep.subr.mxu0 0.0
        %1591 = vmatpush2.msra.mxu0 0.0
        %1592 = vmatprep.subr.mxu0 0.0
        %1593 = vmatpush2.msra.mxu0 0.0
        %1594 = vmatprep.subr.mxu0 0.0
        %1595 = vmatpush2.msra.mxu0 0.0
        %1596 = vmatprep.subr.mxu0 0.0
        %1597 = vmatpush2.msra.mxu0 0.0
        %1598 = vmatprep.subr.mxu0 0.0
        %1599 = vmatpush2.msra.mxu0 0.0
        %1600 = vmatprep.subr.mxu0 0.0
        %1601 = vmatpush2.msra.mxu0 0.0
        %1602 = vmatprep.subr.mxu0 0.0
        %1603 = vmatpush2.msra.mxu0 0.0
        %1604 = vmatprep.subr.mxu0 0.0
        %1605 = vmatpush2.msra.mxu0 0.0
        %1606 = vmatprep.subr.mxu0 0.0
        %1607 = vmatpush2.msra.mxu0 0.0
        %1608 = vmatprep.subr.mxu0 0.0
        %1609 = vmatpush2.msra.mxu0 0.0
        %1610 = vmatprep.subr.mxu0 0.0
        %1611 = vmatpush2.msra.mxu0 0.0
        %1612 = vmatprep.subr.mxu0 0.0
        %1613 = vmatpush2.msra.mxu0 0.0
        %1614 = vmatprep.subr.mxu0 0.0
        %1615 = vmatpush2.msra.mxu0 0.0
        %1616 = vmatprep.mubr.f32.mxu0 0.0
        %1617 = vmatmul.mubr.f32.gmra.mxu0 %v1550
        %v1618 = vpop.f32.mrf.mxu0
        %v1619 = vadd.f32 %v1547, %v1618
        %v1620 = vpop.f32.mrf.mxu0
        %1621 = vdwg.mxu0
        %v1622 = vadd.f32 %v751, %v1619
        %v1623 = vld [vmem:[%s715] sm:$0x1]
        %v1624 = vld [vmem:[%s718] sm:$0x1]
        %v1625 = vsel %vm764, %v1622, 0.0
        %1626 = vadd.xlane.f32.xlu0 %v1625
        %v1627 = vpop.xlane.xlu0 %1626
        %v1628 = vrcp.pop 32.0
        %v1629 = vmul.f32 %v1627, %v1628
        %v1630 = vsub.f32 %v1622, %v1629
        %v1631 = vmul.f32 %v1630, %v1630
        %v1632 = vsel %vm764, %v1631, 0.0
        %1633 = vadd.xlane.f32.xlu0 %v1632
        %v1634 = vpop.xlane.xlu0 %1633
        %v1635 = vmul.f32 %v1634, %v1628
        %v1636 = vadd.f32 %v1635, 1e-05
        %v1637 = vrsqrt.pop %v1636
        %v1638 = vmul.f32 %v1630, %v1637
        %v1640 = vlaneseq
        %v1641 = vshrl.u32 %v1640, 7
        %v1642 = vsub.s32 0, %v1641
        %v1643 = vrot.slane %v1623, %v1642
        %v1645 = vmul.f32 %v1638, %v1643
        %v1647 = vlaneseq
        %v1648 = vshrl.u32 %v1647, 7
        %v1649 = vsub.s32 0, %v1648
        %v1650 = vrot.slane %v1624, %v1649
        %v1652 = vadd.f32 %v1645, %v1650
        %v1653 = vld [vmem:[%s723] sm:$0xff]
        %v1654 = vld [vmem:[%s723 + $0x8] sm:$0xff]
        %v1655 = vld [vmem:[%s723 + $0x10] sm:$0xff]
        %v1656 = vld [vmem:[%s723 + $0x18] sm:$0xff]
        %v1657 = vld [vmem:[%s726] sm:$0x1]
        %v1659 = vlaneseq
        %v1660 = vshrl.u32 %v1659, 7
        %v1661 = vsub.s32 0, %v1660
        %v1662 = vrot.slane %v1657, %v1661
        %v1665 = vsel %vm764, %v1652, 0
        %1667 = vmatprep.subr.mxu0 0.0
        %1668 = vmatpush1.msra.mxu0 0.0
        %1669 = vmatprep.subr.mxu0 0.0
        %1670 = vmatpush1.msra.mxu0 0.0
        %1671 = vmatprep.subr.mxu0 0.0
        %1672 = vmatpush1.msra.mxu0 0.0
        %1673 = vmatprep.subr.mxu0 0.0
        %1674 = vmatpush1.msra.mxu0 0.0
        %1675 = vmatprep.subr.mxu0 0.0
        %1676 = vmatpush1.msra.mxu0 0.0
        %1677 = vmatprep.subr.mxu0 0.0
        %1678 = vmatpush1.msra.mxu0 0.0
        %1679 = vmatprep.subr.mxu0 0.0
        %1680 = vmatpush1.msra.mxu0 0.0
        %1681 = vmatprep.subr.mxu0 0.0
        %1682 = vmatpush1.msra.mxu0 0.0
        %1683 = vmatprep.subr.mxu0 0.0
        %1684 = vmatpush1.msra.mxu0 0.0
        %1685 = vmatprep.subr.mxu0 0.0
        %1686 = vmatpush1.msra.mxu0 0.0
        %1687 = vmatprep.subr.mxu0 0.0
        %1688 = vmatpush1.msra.mxu0 0.0
        %1689 = vmatprep.subr.mxu0 0.0
        %1690 = vmatpush1.msra.mxu0 0.0
        %1691 = vmatprep.subr.mxu0 0.0
        %1692 = vmatpush1.msra.mxu0 %v1656
        %1693 = vmatprep.subr.mxu0 0.0
        %1694 = vmatpush1.msra.mxu0 %v1655
        %1695 = vmatprep.subr.mxu0 0.0
        %1696 = vmatpush1.msra.mxu0 %v1654
        %1697 = vmatprep.subr.mxu0 0.0
        %1698 = vmatpush1.msra.mxu0 %v1653
        %1699 = vmatprep.subr.mxu0 0.0
        %1700 = vmatpush2.msra.mxu0 0.0
        %1701 = vmatprep.subr.mxu0 0.0
        %1702 = vmatpush2.msra.mxu0 0.0
        %1703 = vmatprep.subr.mxu0 0.0
        %1704 = vmatpush2.msra.mxu0 0.0
        %1705 = vmatprep.subr.mxu0 0.0
        %1706 = vmatpush2.msra.mxu0 0.0
        %1707 = vmatprep.subr.mxu0 0.0
        %1708 = vmatpush2.msra.mxu0 0.0
        %1709 = vmatprep.subr.mxu0 0.0
        %1710 = vmatpush2.msra.mxu0 0.0
        %1711 = vmatprep.subr.mxu0 0.0
        %1712 = vmatpush2.msra.mxu0 0.0
        %1713 = vmatprep.subr.mxu0 0.0
        %1714 = vmatpush2.msra.mxu0 0.0
        %1715 = vmatprep.subr.mxu0 0.0
        %1716 = vmatpush2.msra.mxu0 0.0
        %1717 = vmatprep.subr.mxu0 0.0
        %1718 = vmatpush2.msra.mxu0 0.0
        %1719 = vmatprep.subr.mxu0 0.0
        %1720 = vmatpush2.msra.mxu0 0.0
        %1721 = vmatprep.subr.mxu0 0.0
        %1722 = vmatpush2.msra.mxu0 0.0
        %1723 = vmatprep.subr.mxu0 0.0
        %1724 = vmatpush2.msra.mxu0 0.0
        %1725 = vmatprep.subr.mxu0 0.0
        %1726 = vmatpush2.msra.mxu0 0.0
        %1727 = vmatprep.subr.mxu0 0.0
        %1728 = vmatpush2.msra.mxu0 0.0
        %1729 = vmatprep.subr.mxu0 0.0
        %1730 = vmatpush2.msra.mxu0 0.0
        %1731 = vmatprep.mubr.f32.mxu0 0.0
        %1732 = vmatmul.mubr.f32.gmra.mxu0 %v1665
        %v1733 = vpop.f32.mrf.mxu0
        %v1734 = vadd.f32 %v1662, %v1733
        %v1735 = vpop.f32.mrf.mxu0
        %1736 = vdwg.mxu0
        %v1737 = vmax.f32 %v1734, 0.0
        %v1738 = vld [vmem:[%s731] sm:$0xff]
        %v1739 = vld [vmem:[%s731 + $0x8] sm:$0xff]
        %v1740 = vld [vmem:[%s731 + $0x10] sm:$0xff]
        %v1741 = vld [vmem:[%s731 + $0x18] sm:$0xff]
        %v1742 = vld [vmem:[%s731 + $0x20] sm:$0xff]
        %v1743 = vld [vmem:[%s731 + $0x28] sm:$0xff]
        %v1744 = vld [vmem:[%s731 + $0x30] sm:$0xff]
        %v1745 = vld [vmem:[%s731 + $0x38] sm:$0xff]
        %v1746 = vld [vmem:[%s734] sm:$0x1]
        %v1748 = vlaneseq
        %v1749 = vshrl.u32 %v1748, 7
        %v1750 = vsub.s32 0, %v1749
        %v1751 = vrot.slane %v1746, %v1750
        %vm1753 = vcmask 523264
        %v1755 = vsel %vm1753, %v1737, 0
        %1757 = vmatprep.subr.mxu0 0.0
        %1758 = vmatpush1.msra.mxu0 0.0
        %1759 = vmatprep.subr.mxu0 0.0
        %1760 = vmatpush1.msra.mxu0 0.0
        %1761 = vmatprep.subr.mxu0 0.0
        %1762 = vmatpush1.msra.mxu0 0.0
        %1763 = vmatprep.subr.mxu0 0.0
        %1764 = vmatpush1.msra.mxu0 0.0
        %1765 = vmatprep.subr.mxu0 0.0
        %1766 = vmatpush1.msra.mxu0 0.0
        %1767 = vmatprep.subr.mxu0 0.0
        %1768 = vmatpush1.msra.mxu0 0.0
        %1769 = vmatprep.subr.mxu0 0.0
        %1770 = vmatpush1.msra.mxu0 0.0
        %1771 = vmatprep.subr.mxu0 0.0
        %1772 = vmatpush1.msra.mxu0 0.0
        %1773 = vmatprep.subr.mxu0 0.0
        %1774 = vmatpush1.msra.mxu0 %v1745
        %1775 = vmatprep.subr.mxu0 0.0
        %1776 = vmatpush1.msra.mxu0 %v1744
        %1777 = vmatprep.subr.mxu0 0.0
        %1778 = vmatpush1.msra.mxu0 %v1743
        %1779 = vmatprep.subr.mxu0 0.0
        %1780 = vmatpush1.msra.mxu0 %v1742
        %1781 = vmatprep.subr.mxu0 0.0
        %1782 = vmatpush1.msra.mxu0 %v1741
        %1783 = vmatprep.subr.mxu0 0.0
        %1784 = vmatpush1.msra.mxu0 %v1740
        %1785 = vmatprep.subr.mxu0 0.0
        %1786 = vmatpush1.msra.mxu0 %v1739
        %1787 = vmatprep.subr.mxu0 0.0
        %1788 = vmatpush1.msra.mxu0 %v1738
        %1789 = vmatprep.subr.mxu0 0.0
        %1790 = vmatpush2.msra.mxu0 0.0
        %1791 = vmatprep.subr.mxu0 0.0
        %1792 = vmatpush2.msra.mxu0 0.0
        %1793 = vmatprep.subr.mxu0 0.0
        %1794 = vmatpush2.msra.mxu0 0.0
        %1795 = vmatprep.subr.mxu0 0.0
        %1796 = vmatpush2.msra.mxu0 0.0
        %1797 = vmatprep.subr.mxu0 0.0
        %1798 = vmatpush2.msra.mxu0 0.0
        %1799 = vmatprep.subr.mxu0 0.0
        %1800 = vmatpush2.msra.mxu0 0.0
        %1801 = vmatprep.subr.mxu0 0.0
        %1802 = vmatpush2.msra.mxu0 0.0
        %1803 = vmatprep.subr.mxu0 0.0
        %1804 = vmatpush2.msra.mxu0 0.0
        %1805 = vmatprep.subr.mxu0 0.0
        %1806 = vmatpush2.msra.mxu0 0.0
        %1807 = vmatprep.subr.mxu0 0.0
        %1808 = vmatpush2.msra.mxu0 0.0
        %1809 = vmatprep.subr.mxu0 0.0
        %1810 = vmatpush2.msra.mxu0 0.0
        %1811 = vmatprep.subr.mxu0 0.0
        %1812 = vmatpush2.msra.mxu0 0.0
        %1813 = vmatprep.subr.mxu0 0.0
        %1814 = vmatpush2.msra.mxu0 0.0
        %1815 = vmatprep.subr.mxu0 0.0
        %1816 = vmatpush2.msra.mxu0 0.0
        %1817 = vmatprep.subr.mxu0 0.0
        %1818 = vmatpush2.msra.mxu0 0.0
        %1819 = vmatprep.subr.mxu0 0.0
        %1820 = vmatpush2.msra.mxu0 0.0
        %1821 = vmatprep.mubr.f32.mxu0 0.0
        %1822 = vmatmul.mubr.f32.gmra.mxu0 %v1755
        %v1823 = vpop.f32.mrf.mxu0
        %v1824 = vadd.f32 %v1751, %v1823
        %v1825 = vpop.f32.mrf.mxu0
        %1826 = vdwg.mxu0
        %v1827 = vadd.f32 %v1652, %v1824
        %v1828 = vld [vmem:[%s737] sm:$0x1]
        %v1829 = vld [vmem:[%s740] sm:$0x1]
        %v1830 = vsel %vm764, %v1827, 0.0
        %1831 = vadd.xlane.f32.xlu0 %v1830
        %v1832 = vpop.xlane.xlu0 %1831
        %v1833 = vmul.f32 %v1832, %v1628
        %v1834 = vsub.f32 %v1827, %v1833
        %v1835 = vmul.f32 %v1834, %v1834
        %v1836 = vsel %vm764, %v1835, 0.0
        %1837 = vadd.xlane.f32.xlu0 %v1836
        %v1838 = vpop.xlane.xlu0 %1837
        %v1839 = vmul.f32 %v1838, %v1628
        %v1840 = vadd.f32 %v1839, 1e-05
        %v1841 = vrsqrt.pop %v1840
        %v1842 = vmul.f32 %v1834, %v1841
        %v1844 = vlaneseq
        %v1845 = vshrl.u32 %v1844, 7
        %v1846 = vsub.s32 0, %v1845
        %v1847 = vrot.slane %v1828, %v1846
        %v1849 = vmul.f32 %v1842, %v1847
        %v1851 = vlaneseq
        %v1852 = vshrl.u32 %v1851, 7
        %v1853 = vsub.s32 0, %v1852
        %v1854 = vrot.slane %v1829, %v1853
        %v1856 = vadd.f32 %v1849, %v1854
        %1857 = vst.msk [vmem:[%s693] sm:$0xff] %vm764, %v1856
        %s1858 = sand.u32 %s438, 1
        %s1859 = scalar_lea.sflag [#allocation6], %s1858
        %s1860 = sand.u32 %s438, 1
        %s1861 = smul.addr %s1860, 8
        %s1862 = scalar_lea.vmem [#allocation9], %s1861
        // Predicated region
        $region93: #{tpu_custom_call.1} parent=79 // pred_check
          %p1863 = pneg %p448
        $region94: #{tpu_custom_call.1} parent=79 // pred_check_branch
          %1865 = sbr.rel (%p1863) target = $region96
        $region95: #{tpu_custom_call.1} parent=79 // pred_region
          %s1867 = ssub.s32 128, 128
          %1868 = vsyncadd %s1859, %s1867
          %s1869 = smul.addr %s37, 128
          %s1870 = scalar_lea.hbm %s15, %s1869
          %s1872 = sshll.u32 %s1862, 4
          %s1873 = int_to_ptr.vmem [resolvable:$true] %s1872
          %1875 = dma.vmem_to_hbm [thread:$0]  %s1873, 128, %s1870, %s1859
        $region96: #{tpu_custom_call.1} parent=79 // pred_fallthru
          _
      $region80: #{tpu_custom_call.1} parent=5 // pred_fallthru
        _
      %p1876 = scmp.le.s32.totalorder 2, %s28
      // Predicated region
      $region97: #{tpu_custom_call.1} parent=5 // pred_check
        %p1877 = pneg %p1876
      $region98: #{tpu_custom_call.1} parent=5 // pred_check_branch
        %1879 = sbr.rel (%p1877) target = $region100
      $region99: #{tpu_custom_call.1} parent=5 // pred_region
        %s1880 = ssub.s32 %s28, 2
        // Predicated region
        $region101: #{tpu_custom_call.1} parent=99 // pred_check
          %p1881 = pneg %p454
        $region102: #{tpu_custom_call.1} parent=99 // pred_check_branch
          %1883 = sbr.rel (%p1881) target = $region104
        $region103: #{tpu_custom_call.1} parent=99 // pred_region
          %s1884 = sand.u32 %s439, 1
          %s1885 = scalar_lea.sflag [#allocation6], %s1884
          %s1886 = sand.u32 %s439, 1
          %s1887 = smul.addr %s1886, 8
          %s1888 = scalar_lea.vmem [#allocation9], %s1887
          %1889 = dma.done %s1885, 128
        $region104: #{tpu_custom_call.1} parent=99 // pred_fallthru
          _
      $region100: #{tpu_custom_call.1} parent=5 // pred_fallthru
        _
    $region6: #{tpu_custom_call.1} parent=1 // loop_footer
      %s32 = sadd.s32 1, %s28
    $region7: #{tpu_custom_call.1} parent=1 // loop_footer_branch
      %27 = sbr.rel target = $region3
    $region8: #{tpu_custom_call.1} parent=1 // loop_exit
      _
    %1890 = vsyncpa [#allocation5], 1
    %s1891 = scalar_lea.sflag [#allocation5], 1
    %1892 = vsyncpa %s1891, 1
    %1893 = vsyncpa [#allocation8], 1
    %1894 = vsyncpa [#allocation6], 1
    %s1895 = scalar_lea.sflag [#allocation6], 1
    %1896 = vsyncpa %s1895, 1

</llo_original>
